<compile_context>
chip_gen: v5e
topology: v5e:2x2
jax: 0.10.0
libtpu: 0.0.40
codegen_flags: <defaults>
</compile_context>

<pallas_src>
import jax
import jax.numpy as jnp
from jax.experimental import pallas as pl


# ----------------------------------------------------------------------------
# Fused Pallas kernel: all LSTM layers + classifier head in one invocation
# ----------------------------------------------------------------------------
def _make_net_kernel(num_layers, seq_len, batch, hidden, output_dim):
    T, B, H, O = seq_len, batch, hidden, output_dim

    def lstm_layer(gi, w_hh, collect_seq):
        """Serial recurrence given hoisted fused gate inputs.

        gi:    (T*B, 4H) f32 -- input projection + bias, lane blocks [i|f|g|o].
        w_hh:  (H, 4H) fused recurrent weight (bf16).
        Returns (h_last, [h_t ...] if collect_seq else []).
        """
        wdt = w_hh.dtype
        h = jnp.zeros((B, H), jnp.float32)
        c = jnp.zeros((B, H), jnp.float32)
        hs = []
        for t in range(T):  # statically unrolled time loop (T is small and static)
            # ONE fused matmul on the serial dependency chain per step.
            pre = gi[t * B:(t + 1) * B, :] + jnp.dot(
                h.astype(wdt), w_hh, preferred_element_type=jnp.float32)   # (B, 4H) f32
            # Full-lane nonlinearities, then static lane slices per gate (i, f, g, o).
            sig = jax.nn.sigmoid(pre)
            th = jnp.tanh(pre)
            i_g = sig[:, 0 * H:1 * H]
            f_g = sig[:, 1 * H:2 * H]
            g_g = th[:, 2 * H:3 * H]
            o_g = sig[:, 3 * H:4 * H]
            c = f_g * c + i_g * g_g
            h = o_g * jnp.tanh(c)
            if collect_seq:
                hs.append(h)
        return h, hs

    def kernel(*refs):
        # refs layout:
        #   x(T*B, E) bf16,
        #   [w_ih(In, 4H), w_hh(H, 4H), b(1, 4H)] * num_layers,
        #   w_fc, b_fc(1, O), out(B, O)
        x_ref = refs[0]
        w_fc_ref = refs[1 + 3 * num_layers]
        b_fc_ref = refs[2 + 3 * num_layers]
        out_ref = refs[3 + 3 * num_layers]

        xin = x_ref[...]                               # (T*B, E) bf16, row = t*B + b
        h_last = None
        for layer in range(num_layers):
            w_ih = refs[1 + 3 * layer][...]            # (In, 4H) bf16
            w_hh = refs[2 + 3 * layer][...]            # (H, 4H)  bf16
            b = refs[3 + 3 * layer][...]               # (1, 4H)  f32
            # Hoisted fused input projection (off the serial chain), bias folded once.
            gi = jnp.dot(xin, w_ih, preferred_element_type=jnp.float32) + b  # (T*B, 4H) f32
            collect = layer + 1 < num_layers
            h_last, hs = lstm_layer(gi, w_hh, collect)
            if collect:
                # Next layer's input: on-chip hidden sequence, same row order t*B + b.
                xin = jnp.concatenate(hs, axis=0).astype(w_ih.dtype)         # (T*B, H) bf16

        # --------------------------- classifier head -------------------------
        if O == 1:
            # VPU multiply + lane reduction: avoids an N=1 MXU push+drain at the tail.
            logits = jnp.sum(h_last * w_fc_ref[...], axis=-1, keepdims=True) + b_fc_ref[...]
        else:
            logits = (jnp.dot(h_last.astype(w_fc_ref.dtype), w_fc_ref[...],
                              preferred_element_type=jnp.float32) + b_fc_ref[...])
        out_ref[...] = jax.nn.sigmoid(logits).astype(out_ref.dtype)

    return kernel


def _full_block(a):
    """Whole-array VMEM block (no grid)."""
    nd = a.ndim

    def idx():
        return (0,) * nd

    return pl.BlockSpec(a.shape, idx)


def net_pallas_forward(x2d, lstm_params, w_fc, b_fc, *, seq_len, batch):
    """x2d: (T*B, E) time-major-flattened embedded tokens (bf16) -> (B, O) probabilities."""
    T, B = seq_len, batch
    H = lstm_params[0]["w_hh"].shape[0]
    O = b_fc.shape[-1]

    operands = [x2d]
    for lp in lstm_params:
        operands += [lp["w_ih"], lp["w_hh"], lp["b"]]
    operands += [w_fc, b_fc]

    kernel = _make_net_kernel(len(lstm_params), T, B, H, O)
    return pl.pallas_call(
        kernel,
        out_shape=jax.ShapeDtypeStruct((B, O), jnp.float32),
        in_specs=[_full_block(a) for a in operands],
        out_specs=pl.BlockSpec((B, O), lambda: (0, 0)),
    )(*operands)


# ----------------------------------------------------------------------------
# Parameters (PyTorch shapes; gate order i, f, g, o; fused (In,4H)/(H,4H) layout)
# ----------------------------------------------------------------------------
def init_params(key, vocab_size, embedding_dim, num_layers, hidden_dim, output_dim,
                weight_dtype=jnp.bfloat16):
    keys = jax.random.split(key, 3 + 4 * num_layers)
    ki = iter(keys)
    H = hidden_dim

    params = {}
    params["embedding"] = jax.random.normal(next(ki), (vocab_size, embedding_dim), jnp.float32)

    def xavier_uniform(k, fan_out, fan_in):
        limit = jnp.sqrt(6.0 / (fan_in + fan_out))
        return jax.random.uniform(k, (fan_out, fan_in), jnp.float32, -limit, limit)

    lstm = []
    for layer in range(num_layers):
        in_dim = embedding_dim if layer == 0 else hidden_dim
        # PyTorch nn.LSTM layout: (4H, in) / (4H, H), rows blocked [i; f; g; o].
        w_ih = xavier_uniform(next(ki), 4 * H, in_dim)
        w_hh = xavier_uniform(next(ki), 4 * H, H)
        bound = 1.0 / jnp.sqrt(H)
        b_ih = jax.random.uniform(next(ki), (4 * H,), jnp.float32, -bound, bound)
        b_hh = jax.random.uniform(next(ki), (4 * H,), jnp.float32, -bound, bound)
        lstm.append(dict(
            # Fused, transposed layouts: columns are lane blocks [i|f|g|o].
            w_ih=jnp.transpose(w_ih).astype(weight_dtype),            # (in, 4H)
            w_hh=jnp.transpose(w_hh).astype(weight_dtype),            # (H, 4H)
            b=(b_ih + b_hh).reshape(1, 4 * H).astype(jnp.float32),    # (1, 4H)
        ))
    params["lstm"] = lstm

    bound = 1.0 / jnp.sqrt(H)
    w_fc = jax.random.uniform(next(ki), (output_dim, H), jnp.float32, -bound, bound)
    b_fc = jax.random.uniform(next(ki), (output_dim,), jnp.float32, -bound, bound)
    if output_dim == 1:
        params["fc_w"] = w_fc.astype(jnp.float32)                     # (1, H): VPU head
    else:
        params["fc_w"] = jnp.transpose(w_fc).astype(weight_dtype)     # (H, O): MXU head
    params["fc_b"] = b_fc.reshape(1, output_dim).astype(jnp.float32)
    return params


# ----------------------------------------------------------------------------
# Forward pass (eval mode) and a pure-jnp reference for validation
# ----------------------------------------------------------------------------
@jax.jit
def net_forward(params, token_ids):
    """token_ids: (B, T) int32 -> (B, output_dim) float32 probabilities."""
    B, T = token_ids.shape
    # Embedding gather directly into time-major flattened row order (row = t*B + b);
    # only the tiny (B, T) id matrix is transposed, never the embedded activations.
    ids_tm = jnp.transpose(token_ids).reshape(-1)                      # (T*B,)
    x2d = jnp.take(params["embedding"], ids_tm, axis=0).astype(jnp.bfloat16)  # (T*B, E)
    # Dropout(0.5) is identity at inference.
    return net_pallas_forward(x2d, params["lstm"], params["fc_w"], params["fc_b"],
                              seq_len=T, batch=B)


def net_reference(params, token_ids):
    """Pure-jnp reference mirroring the kernel math (bf16 weights, f32 accumulate)."""
    emb = jnp.take(params["embedding"], token_ids, axis=0)             # (B, T, E)
    x = jnp.transpose(emb, (1, 0, 2)).astype(jnp.bfloat16)             # (T, B, E)
    T, B, _ = x.shape
    xin = x
    h_last = None
    for lp in params["lstm"]:
        w_ih, w_hh, b = lp["w_ih"], lp["w_hh"], lp["b"]
        H = w_hh.shape[0]
        h = jnp.zeros((B, H), jnp.float32)
        c = jnp.zeros((B, H), jnp.float32)
        outs = []
        for t in range(T):
            pre = (jnp.dot(xin[t], w_ih, preferred_element_type=jnp.float32) + b
                   + jnp.dot(h.astype(w_hh.dtype), w_hh, preferred_element_type=jnp.float32))
            i_g = jax.nn.sigmoid(pre[:, 0 * H:1 * H])
            f_g = jax.nn.sigmoid(pre[:, 1 * H:2 * H])
            g_g = jnp.tanh(pre[:, 2 * H:3 * H])
            o_g = jax.nn.sigmoid(pre[:, 3 * H:4 * H])
            c = f_g * c + i_g * g_g
            h = o_g * jnp.tanh(c)
            outs.append(h)
        h_last = h
        xin = jnp.stack(outs, axis=0).astype(w_ih.dtype)               # (T, B, H)
    if params["fc_b"].shape[-1] == 1:
        logits = jnp.sum(h_last * params["fc_w"], axis=-1, keepdims=True) + params["fc_b"]
    else:
        logits = jnp.dot(h_last.astype(params["fc_w"].dtype), params["fc_w"],
                         preferred_element_type=jnp.float32) + params["fc_b"]
    return jax.nn.sigmoid(logits)


if __name__ == "__main__":
    VOCAB = 10000
    EMBEDDING_DIM = 32
    NUM_LAYERS = 2
    HIDDEN_DIM = 32
    OUTPUT_DIM = 1
    B, T = 2, 8

    key = jax.random.PRNGKey(0)
    k_params, k_ids = jax.random.split(key)

    params = init_params(k_params, VOCAB, EMBEDDING_DIM, NUM_LAYERS, HIDDEN_DIM, OUTPUT_DIM)
    token_ids = jax.random.randint(k_ids, (B, T), 0, VOCAB, dtype=jnp.int32)

    out = jax.block_until_ready(net_forward(params, token_ids))
    ref = jax.block_until_ready(net_reference(params, token_ids))

    assert out.shape == (B, OUTPUT_DIM)
    assert bool(jnp.all((out >= 0.0) & (out <= 1.0)))
    assert bool(jnp.allclose(out, ref, atol=2e-2)), (out, ref)
    print("KERNEL_OK")
</pallas_src>

<mosaic_0001>
module attributes {stable_mosaic.version = 11 : i64} {
  func.func @kernel(%arg0: memref<16x32xbf16, #tpu.memory_space<vmem>>, %arg1: memref<32x128xbf16, #tpu.memory_space<vmem>>, %arg2: memref<32x128xbf16, #tpu.memory_space<vmem>>, %arg3: memref<1x128xf32, #tpu.memory_space<vmem>>, %arg4: memref<32x128xbf16, #tpu.memory_space<vmem>>, %arg5: memref<32x128xbf16, #tpu.memory_space<vmem>>, %arg6: memref<1x128xf32, #tpu.memory_space<vmem>>, %arg7: memref<1x32xf32, #tpu.memory_space<vmem>>, %arg8: memref<1x1xf32, #tpu.memory_space<vmem>>, %arg9: memref<2x1xf32, #tpu.memory_space<vmem>>) attributes {dimension_semantics = [], scalar_prefetch = 0 : i64, scratch_operands = 0 : i64, tpu.core_type = #tpu.core_type<tc>} {
    %c0 = arith.constant 0 : index
    %c0_0 = arith.constant 0 : index
    %0 = vector.load %arg0[%c0, %c0_0] : memref<16x32xbf16, #tpu.memory_space<vmem>>, vector<16x32xbf16>
    %c0_1 = arith.constant 0 : index
    %c0_2 = arith.constant 0 : index
    %1 = vector.load %arg1[%c0_1, %c0_2] : memref<32x128xbf16, #tpu.memory_space<vmem>>, vector<32x128xbf16>
    %c0_3 = arith.constant 0 : index
    %c0_4 = arith.constant 0 : index
    %2 = vector.load %arg2[%c0_3, %c0_4] : memref<32x128xbf16, #tpu.memory_space<vmem>>, vector<32x128xbf16>
    %c0_5 = arith.constant 0 : index
    %c0_6 = arith.constant 0 : index
    %3 = vector.load %arg3[%c0_5, %c0_6] : memref<1x128xf32, #tpu.memory_space<vmem>>, vector<1x128xf32>
    %cst = arith.constant dense<0.000000e+00> : vector<16x128xf32>
    %4 = tpu.matmul %0, %1, %cst {dimension_numbers = #tpu.dot_dimension_numbers<[1], [0], [0], [1], [0, 0, 1, 1], [], []>} : vector<16x32xbf16>, vector<32x128xbf16>, vector<16x128xf32> -> vector<16x128xf32>
    %5 = vector.broadcast %3 : vector<1x128xf32> to vector<16x128xf32>
    %6 = arith.addf %4, %5 : vector<16x128xf32>
    %cst_7 = arith.constant 0.000000e+00 : f32
    %7 = vector.broadcast %cst_7 : f32 to vector<2x32xf32>
    %cst_8 = arith.constant 0.000000e+00 : f32
    %8 = vector.broadcast %cst_8 : f32 to vector<2x32xf32>
    %9 = vector.extract_strided_slice %6 {offsets = [0, 0], sizes = [2, 128], strides = [1, 1]} : vector<16x128xf32> to vector<2x128xf32>
    %10 = arith.truncf %7 : vector<2x32xf32> to vector<2x32xbf16>
    %cst_9 = arith.constant dense<0.000000e+00> : vector<2x128xf32>
    %11 = tpu.matmul %10, %2, %cst_9 {dimension_numbers = #tpu.dot_dimension_numbers<[1], [0], [0], [1], [0, 0, 1, 1], [], []>} : vector<2x32xbf16>, vector<32x128xbf16>, vector<2x128xf32> -> vector<2x128xf32>
    %12 = arith.addf %9, %11 : vector<2x128xf32>
    %13 = arith.negf %12 : vector<2x128xf32>
    %14 = math.exp %13 : vector<2x128xf32>
    %cst_10 = arith.constant 1.000000e+00 : f32
    %15 = vector.broadcast %cst_10 : f32 to vector<2x128xf32>
    %16 = arith.addf %15, %14 : vector<2x128xf32>
    %17 = arith.divf %15, %16 : vector<2x128xf32>
    %18 = math.tanh %12 : vector<2x128xf32>
    %19 = vector.extract_strided_slice %17 {offsets = [0, 0], sizes = [2, 32], strides = [1, 1]} : vector<2x128xf32> to vector<2x32xf32>
    %20 = vector.extract_strided_slice %17 {offsets = [0, 32], sizes = [2, 32], strides = [1, 1]} : vector<2x128xf32> to vector<2x32xf32>
    %21 = vector.extract_strided_slice %18 {offsets = [0, 64], sizes = [2, 32], strides = [1, 1]} : vector<2x128xf32> to vector<2x32xf32>
    %22 = vector.extract_strided_slice %17 {offsets = [0, 96], sizes = [2, 32], strides = [1, 1]} : vector<2x128xf32> to vector<2x32xf32>
    %23 = arith.mulf %20, %8 : vector<2x32xf32>
    %24 = arith.mulf %19, %21 : vector<2x32xf32>
    %25 = arith.addf %23, %24 : vector<2x32xf32>
    %26 = math.tanh %25 : vector<2x32xf32>
    %27 = arith.mulf %22, %26 : vector<2x32xf32>
    %28 = vector.extract_strided_slice %6 {offsets = [2, 0], sizes = [2, 128], strides = [1, 1]} : vector<16x128xf32> to vector<2x128xf32>
    %29 = arith.truncf %27 : vector<2x32xf32> to vector<2x32xbf16>
    %cst_11 = arith.constant dense<0.000000e+00> : vector<2x128xf32>
    %30 = tpu.matmul %29, %2, %cst_11 {dimension_numbers = #tpu.dot_dimension_numbers<[1], [0], [0], [1], [0, 0, 1, 1], [], []>} : vector<2x32xbf16>, vector<32x128xbf16>, vector<2x128xf32> -> vector<2x128xf32>
    %31 = arith.addf %28, %30 : vector<2x128xf32>
    %32 = arith.negf %31 : vector<2x128xf32>
    %33 = math.exp %32 : vector<2x128xf32>
    %cst_12 = arith.constant 1.000000e+00 : f32
    %34 = vector.broadcast %cst_12 : f32 to vector<2x128xf32>
    %35 = arith.addf %34, %33 : vector<2x128xf32>
    %36 = arith.divf %34, %35 : vector<2x128xf32>
    %37 = math.tanh %31 : vector<2x128xf32>
    %38 = vector.extract_strided_slice %36 {offsets = [0, 0], sizes = [2, 32], strides = [1, 1]} : vector<2x128xf32> to vector<2x32xf32>
    %39 = vector.extract_strided_slice %36 {offsets = [0, 32], sizes = [2, 32], strides = [1, 1]} : vector<2x128xf32> to vector<2x32xf32>
    %40 = vector.extract_strided_slice %37 {offsets = [0, 64], sizes = [2, 32], strides = [1, 1]} : vector<2x128xf32> to vector<2x32xf32>
    %41 = vector.extract_strided_slice %36 {offsets = [0, 96], sizes = [2, 32], strides = [1, 1]} : vector<2x128xf32> to vector<2x32xf32>
    %42 = arith.mulf %39, %25 : vector<2x32xf32>
    %43 = arith.mulf %38, %40 : vector<2x32xf32>
    %44 = arith.addf %42, %43 : vector<2x32xf32>
    %45 = math.tanh %44 : vector<2x32xf32>
    %46 = arith.mulf %41, %45 : vector<2x32xf32>
    %47 = vector.extract_strided_slice %6 {offsets = [4, 0], sizes = [2, 128], strides = [1, 1]} : vector<16x128xf32> to vector<2x128xf32>
    %48 = arith.truncf %46 : vector<2x32xf32> to vector<2x32xbf16>
    %cst_13 = arith.constant dense<0.000000e+00> : vector<2x128xf32>
    %49 = tpu.matmul %48, %2, %cst_13 {dimension_numbers = #tpu.dot_dimension_numbers<[1], [0], [0], [1], [0, 0, 1, 1], [], []>} : vector<2x32xbf16>, vector<32x128xbf16>, vector<2x128xf32> -> vector<2x128xf32>
    %50 = arith.addf %47, %49 : vector<2x128xf32>
    %51 = arith.negf %50 : vector<2x128xf32>
    %52 = math.exp %51 : vector<2x128xf32>
    %cst_14 = arith.constant 1.000000e+00 : f32
    %53 = vector.broadcast %cst_14 : f32 to vector<2x128xf32>
    %54 = arith.addf %53, %52 : vector<2x128xf32>
    %55 = arith.divf %53, %54 : vector<2x128xf32>
    %56 = math.tanh %50 : vector<2x128xf32>
    %57 = vector.extract_strided_slice %55 {offsets = [0, 0], sizes = [2, 32], strides = [1, 1]} : vector<2x128xf32> to vector<2x32xf32>
    %58 = vector.extract_strided_slice %55 {offsets = [0, 32], sizes = [2, 32], strides = [1, 1]} : vector<2x128xf32> to vector<2x32xf32>
    %59 = vector.extract_strided_slice %56 {offsets = [0, 64], sizes = [2, 32], strides = [1, 1]} : vector<2x128xf32> to vector<2x32xf32>
    %60 = vector.extract_strided_slice %55 {offsets = [0, 96], sizes = [2, 32], strides = [1, 1]} : vector<2x128xf32> to vector<2x32xf32>
    %61 = arith.mulf %58, %44 : vector<2x32xf32>
    %62 = arith.mulf %57, %59 : vector<2x32xf32>
    %63 = arith.addf %61, %62 : vector<2x32xf32>
    %64 = math.tanh %63 : vector<2x32xf32>
    %65 = arith.mulf %60, %64 : vector<2x32xf32>
    %66 = vector.extract_strided_slice %6 {offsets = [6, 0], sizes = [2, 128], strides = [1, 1]} : vector<16x128xf32> to vector<2x128xf32>
    %67 = arith.truncf %65 : vector<2x32xf32> to vector<2x32xbf16>
    %cst_15 = arith.constant dense<0.000000e+00> : vector<2x128xf32>
    %68 = tpu.matmul %67, %2, %cst_15 {dimension_numbers = #tpu.dot_dimension_numbers<[1], [0], [0], [1], [0, 0, 1, 1], [], []>} : vector<2x32xbf16>, vector<32x128xbf16>, vector<2x128xf32> -> vector<2x128xf32>
    %69 = arith.addf %66, %68 : vector<2x128xf32>
    %70 = arith.negf %69 : vector<2x128xf32>
    %71 = math.exp %70 : vector<2x128xf32>
    %cst_16 = arith.constant 1.000000e+00 : f32
    %72 = vector.broadcast %cst_16 : f32 to vector<2x128xf32>
    %73 = arith.addf %72, %71 : vector<2x128xf32>
    %74 = arith.divf %72, %73 : vector<2x128xf32>
    %75 = math.tanh %69 : vector<2x128xf32>
    %76 = vector.extract_strided_slice %74 {offsets = [0, 0], sizes = [2, 32], strides = [1, 1]} : vector<2x128xf32> to vector<2x32xf32>
    %77 = vector.extract_strided_slice %74 {offsets = [0, 32], sizes = [2, 32], strides = [1, 1]} : vector<2x128xf32> to vector<2x32xf32>
    %78 = vector.extract_strided_slice %75 {offsets = [0, 64], sizes = [2, 32], strides = [1, 1]} : vector<2x128xf32> to vector<2x32xf32>
    %79 = vector.extract_strided_slice %74 {offsets = [0, 96], sizes = [2, 32], strides = [1, 1]} : vector<2x128xf32> to vector<2x32xf32>
    %80 = arith.mulf %77, %63 : vector<2x32xf32>
    %81 = arith.mulf %76, %78 : vector<2x32xf32>
    %82 = arith.addf %80, %81 : vector<2x32xf32>
    %83 = math.tanh %82 : vector<2x32xf32>
    %84 = arith.mulf %79, %83 : vector<2x32xf32>
    %85 = vector.extract_strided_slice %6 {offsets = [8, 0], sizes = [2, 128], strides = [1, 1]} : vector<16x128xf32> to vector<2x128xf32>
    %86 = arith.truncf %84 : vector<2x32xf32> to vector<2x32xbf16>
    %cst_17 = arith.constant dense<0.000000e+00> : vector<2x128xf32>
    %87 = tpu.matmul %86, %2, %cst_17 {dimension_numbers = #tpu.dot_dimension_numbers<[1], [0], [0], [1], [0, 0, 1, 1], [], []>} : vector<2x32xbf16>, vector<32x128xbf16>, vector<2x128xf32> -> vector<2x128xf32>
    %88 = arith.addf %85, %87 : vector<2x128xf32>
    %89 = arith.negf %88 : vector<2x128xf32>
    %90 = math.exp %89 : vector<2x128xf32>
    %cst_18 = arith.constant 1.000000e+00 : f32
    %91 = vector.broadcast %cst_18 : f32 to vector<2x128xf32>
    %92 = arith.addf %91, %90 : vector<2x128xf32>
    %93 = arith.divf %91, %92 : vector<2x128xf32>
    %94 = math.tanh %88 : vector<2x128xf32>
    %95 = vector.extract_strided_slice %93 {offsets = [0, 0], sizes = [2, 32], strides = [1, 1]} : vector<2x128xf32> to vector<2x32xf32>
    %96 = vector.extract_strided_slice %93 {offsets = [0, 32], sizes = [2, 32], strides = [1, 1]} : vector<2x128xf32> to vector<2x32xf32>
    %97 = vector.extract_strided_slice %94 {offsets = [0, 64], sizes = [2, 32], strides = [1, 1]} : vector<2x128xf32> to vector<2x32xf32>
    %98 = vector.extract_strided_slice %93 {offsets = [0, 96], sizes = [2, 32], strides = [1, 1]} : vector<2x128xf32> to vector<2x32xf32>
    %99 = arith.mulf %96, %82 : vector<2x32xf32>
    %100 = arith.mulf %95, %97 : vector<2x32xf32>
    %101 = arith.addf %99, %100 : vector<2x32xf32>
    %102 = math.tanh %101 : vector<2x32xf32>
    %103 = arith.mulf %98, %102 : vector<2x32xf32>
    %104 = vector.extract_strided_slice %6 {offsets = [10, 0], sizes = [2, 128], strides = [1, 1]} : vector<16x128xf32> to vector<2x128xf32>
    %105 = arith.truncf %103 : vector<2x32xf32> to vector<2x32xbf16>
    %cst_19 = arith.constant dense<0.000000e+00> : vector<2x128xf32>
    %106 = tpu.matmul %105, %2, %cst_19 {dimension_numbers = #tpu.dot_dimension_numbers<[1], [0], [0], [1], [0, 0, 1, 1], [], []>} : vector<2x32xbf16>, vector<32x128xbf16>, vector<2x128xf32> -> vector<2x128xf32>
    %107 = arith.addf %104, %106 : vector<2x128xf32>
    %108 = arith.negf %107 : vector<2x128xf32>
    %109 = math.exp %108 : vector<2x128xf32>
    %cst_20 = arith.constant 1.000000e+00 : f32
    %110 = vector.broadcast %cst_20 : f32 to vector<2x128xf32>
    %111 = arith.addf %110, %109 : vector<2x128xf32>
    %112 = arith.divf %110, %111 : vector<2x128xf32>
    %113 = math.tanh %107 : vector<2x128xf32>
    %114 = vector.extract_strided_slice %112 {offsets = [0, 0], sizes = [2, 32], strides = [1, 1]} : vector<2x128xf32> to vector<2x32xf32>
    %115 = vector.extract_strided_slice %112 {offsets = [0, 32], sizes = [2, 32], strides = [1, 1]} : vector<2x128xf32> to vector<2x32xf32>
    %116 = vector.extract_strided_slice %113 {offsets = [0, 64], sizes = [2, 32], strides = [1, 1]} : vector<2x128xf32> to vector<2x32xf32>
    %117 = vector.extract_strided_slice %112 {offsets = [0, 96], sizes = [2, 32], strides = [1, 1]} : vector<2x128xf32> to vector<2x32xf32>
    %118 = arith.mulf %115, %101 : vector<2x32xf32>
    %119 = arith.mulf %114, %116 : vector<2x32xf32>
    %120 = arith.addf %118, %119 : vector<2x32xf32>
    %121 = math.tanh %120 : vector<2x32xf32>
    %122 = arith.mulf %117, %121 : vector<2x32xf32>
    %123 = vector.extract_strided_slice %6 {offsets = [12, 0], sizes = [2, 128], strides = [1, 1]} : vector<16x128xf32> to vector<2x128xf32>
    %124 = arith.truncf %122 : vector<2x32xf32> to vector<2x32xbf16>
    %cst_21 = arith.constant dense<0.000000e+00> : vector<2x128xf32>
    %125 = tpu.matmul %124, %2, %cst_21 {dimension_numbers = #tpu.dot_dimension_numbers<[1], [0], [0], [1], [0, 0, 1, 1], [], []>} : vector<2x32xbf16>, vector<32x128xbf16>, vector<2x128xf32> -> vector<2x128xf32>
    %126 = arith.addf %123, %125 : vector<2x128xf32>
    %127 = arith.negf %126 : vector<2x128xf32>
    %128 = math.exp %127 : vector<2x128xf32>
    %cst_22 = arith.constant 1.000000e+00 : f32
    %129 = vector.broadcast %cst_22 : f32 to vector<2x128xf32>
    %130 = arith.addf %129, %128 : vector<2x128xf32>
    %131 = arith.divf %129, %130 : vector<2x128xf32>
    %132 = math.tanh %126 : vector<2x128xf32>
    %133 = vector.extract_strided_slice %131 {offsets = [0, 0], sizes = [2, 32], strides = [1, 1]} : vector<2x128xf32> to vector<2x32xf32>
    %134 = vector.extract_strided_slice %131 {offsets = [0, 32], sizes = [2, 32], strides = [1, 1]} : vector<2x128xf32> to vector<2x32xf32>
    %135 = vector.extract_strided_slice %132 {offsets = [0, 64], sizes = [2, 32], strides = [1, 1]} : vector<2x128xf32> to vector<2x32xf32>
    %136 = vector.extract_strided_slice %131 {offsets = [0, 96], sizes = [2, 32], strides = [1, 1]} : vector<2x128xf32> to vector<2x32xf32>
    %137 = arith.mulf %134, %120 : vector<2x32xf32>
    %138 = arith.mulf %133, %135 : vector<2x32xf32>
    %139 = arith.addf %137, %138 : vector<2x32xf32>
    %140 = math.tanh %139 : vector<2x32xf32>
    %141 = arith.mulf %136, %140 : vector<2x32xf32>
    %142 = vector.extract_strided_slice %6 {offsets = [14, 0], sizes = [2, 128], strides = [1, 1]} : vector<16x128xf32> to vector<2x128xf32>
    %143 = arith.truncf %141 : vector<2x32xf32> to vector<2x32xbf16>
    %cst_23 = arith.constant dense<0.000000e+00> : vector<2x128xf32>
    %144 = tpu.matmul %143, %2, %cst_23 {dimension_numbers = #tpu.dot_dimension_numbers<[1], [0], [0], [1], [0, 0, 1, 1], [], []>} : vector<2x32xbf16>, vector<32x128xbf16>, vector<2x128xf32> -> vector<2x128xf32>
    %145 = arith.addf %142, %144 : vector<2x128xf32>
    %146 = arith.negf %145 : vector<2x128xf32>
    %147 = math.exp %146 : vector<2x128xf32>
    %cst_24 = arith.constant 1.000000e+00 : f32
    %148 = vector.broadcast %cst_24 : f32 to vector<2x128xf32>
    %149 = arith.addf %148, %147 : vector<2x128xf32>
    %150 = arith.divf %148, %149 : vector<2x128xf32>
    %151 = math.tanh %145 : vector<2x128xf32>
    %152 = vector.extract_strided_slice %150 {offsets = [0, 0], sizes = [2, 32], strides = [1, 1]} : vector<2x128xf32> to vector<2x32xf32>
    %153 = vector.extract_strided_slice %150 {offsets = [0, 32], sizes = [2, 32], strides = [1, 1]} : vector<2x128xf32> to vector<2x32xf32>
    %154 = vector.extract_strided_slice %151 {offsets = [0, 64], sizes = [2, 32], strides = [1, 1]} : vector<2x128xf32> to vector<2x32xf32>
    %155 = vector.extract_strided_slice %150 {offsets = [0, 96], sizes = [2, 32], strides = [1, 1]} : vector<2x128xf32> to vector<2x32xf32>
    %156 = arith.mulf %153, %139 : vector<2x32xf32>
    %157 = arith.mulf %152, %154 : vector<2x32xf32>
    %158 = arith.addf %156, %157 : vector<2x32xf32>
    %159 = math.tanh %158 : vector<2x32xf32>
    %160 = arith.mulf %155, %159 : vector<2x32xf32>
    %161 = tpu.concatenate %27, %46, %65, %84, %103, %122, %141, %160 in 0 : vector<2x32xf32>, vector<2x32xf32>, vector<2x32xf32>, vector<2x32xf32>, vector<2x32xf32>, vector<2x32xf32>, vector<2x32xf32>, vector<2x32xf32> -> vector<16x32xf32>
    %162 = arith.truncf %161 : vector<16x32xf32> to vector<16x32xbf16>
    %c0_25 = arith.constant 0 : index
    %c0_26 = arith.constant 0 : index
    %163 = vector.load %arg4[%c0_25, %c0_26] : memref<32x128xbf16, #tpu.memory_space<vmem>>, vector<32x128xbf16>
    %c0_27 = arith.constant 0 : index
    %c0_28 = arith.constant 0 : index
    %164 = vector.load %arg5[%c0_27, %c0_28] : memref<32x128xbf16, #tpu.memory_space<vmem>>, vector<32x128xbf16>
    %c0_29 = arith.constant 0 : index
    %c0_30 = arith.constant 0 : index
    %165 = vector.load %arg6[%c0_29, %c0_30] : memref<1x128xf32, #tpu.memory_space<vmem>>, vector<1x128xf32>
    %cst_31 = arith.constant dense<0.000000e+00> : vector<16x128xf32>
    %166 = tpu.matmul %162, %163, %cst_31 {dimension_numbers = #tpu.dot_dimension_numbers<[1], [0], [0], [1], [0, 0, 1, 1], [], []>} : vector<16x32xbf16>, vector<32x128xbf16>, vector<16x128xf32> -> vector<16x128xf32>
    %167 = vector.broadcast %165 : vector<1x128xf32> to vector<16x128xf32>
    %168 = arith.addf %166, %167 : vector<16x128xf32>
    %cst_32 = arith.constant 0.000000e+00 : f32
    %169 = vector.broadcast %cst_32 : f32 to vector<2x32xf32>
    %cst_33 = arith.constant 0.000000e+00 : f32
    %170 = vector.broadcast %cst_33 : f32 to vector<2x32xf32>
    %171 = vector.extract_strided_slice %168 {offsets = [0, 0], sizes = [2, 128], strides = [1, 1]} : vector<16x128xf32> to vector<2x128xf32>
    %172 = arith.truncf %169 : vector<2x32xf32> to vector<2x32xbf16>
    %cst_34 = arith.constant dense<0.000000e+00> : vector<2x128xf32>
    %173 = tpu.matmul %172, %164, %cst_34 {dimension_numbers = #tpu.dot_dimension_numbers<[1], [0], [0], [1], [0, 0, 1, 1], [], []>} : vector<2x32xbf16>, vector<32x128xbf16>, vector<2x128xf32> -> vector<2x128xf32>
    %174 = arith.addf %171, %173 : vector<2x128xf32>
    %175 = arith.negf %174 : vector<2x128xf32>
    %176 = math.exp %175 : vector<2x128xf32>
    %cst_35 = arith.constant 1.000000e+00 : f32
    %177 = vector.broadcast %cst_35 : f32 to vector<2x128xf32>
    %178 = arith.addf %177, %176 : vector<2x128xf32>
    %179 = arith.divf %177, %178 : vector<2x128xf32>
    %180 = math.tanh %174 : vector<2x128xf32>
    %181 = vector.extract_strided_slice %179 {offsets = [0, 0], sizes = [2, 32], strides = [1, 1]} : vector<2x128xf32> to vector<2x32xf32>
    %182 = vector.extract_strided_slice %179 {offsets = [0, 32], sizes = [2, 32], strides = [1, 1]} : vector<2x128xf32> to vector<2x32xf32>
    %183 = vector.extract_strided_slice %180 {offsets = [0, 64], sizes = [2, 32], strides = [1, 1]} : vector<2x128xf32> to vector<2x32xf32>
    %184 = vector.extract_strided_slice %179 {offsets = [0, 96], sizes = [2, 32], strides = [1, 1]} : vector<2x128xf32> to vector<2x32xf32>
    %185 = arith.mulf %182, %170 : vector<2x32xf32>
    %186 = arith.mulf %181, %183 : vector<2x32xf32>
    %187 = arith.addf %185, %186 : vector<2x32xf32>
    %188 = math.tanh %187 : vector<2x32xf32>
    %189 = arith.mulf %184, %188 : vector<2x32xf32>
    %190 = vector.extract_strided_slice %168 {offsets = [2, 0], sizes = [2, 128], strides = [1, 1]} : vector<16x128xf32> to vector<2x128xf32>
    %191 = arith.truncf %189 : vector<2x32xf32> to vector<2x32xbf16>
    %cst_36 = arith.constant dense<0.000000e+00> : vector<2x128xf32>
    %192 = tpu.matmul %191, %164, %cst_36 {dimension_numbers = #tpu.dot_dimension_numbers<[1], [0], [0], [1], [0, 0, 1, 1], [], []>} : vector<2x32xbf16>, vector<32x128xbf16>, vector<2x128xf32> -> vector<2x128xf32>
    %193 = arith.addf %190, %192 : vector<2x128xf32>
    %194 = arith.negf %193 : vector<2x128xf32>
    %195 = math.exp %194 : vector<2x128xf32>
    %cst_37 = arith.constant 1.000000e+00 : f32
    %196 = vector.broadcast %cst_37 : f32 to vector<2x128xf32>
    %197 = arith.addf %196, %195 : vector<2x128xf32>
    %198 = arith.divf %196, %197 : vector<2x128xf32>
    %199 = math.tanh %193 : vector<2x128xf32>
    %200 = vector.extract_strided_slice %198 {offsets = [0, 0], sizes = [2, 32], strides = [1, 1]} : vector<2x128xf32> to vector<2x32xf32>
    %201 = vector.extract_strided_slice %198 {offsets = [0, 32], sizes = [2, 32], strides = [1, 1]} : vector<2x128xf32> to vector<2x32xf32>
    %202 = vector.extract_strided_slice %199 {offsets = [0, 64], sizes = [2, 32], strides = [1, 1]} : vector<2x128xf32> to vector<2x32xf32>
    %203 = vector.extract_strided_slice %198 {offsets = [0, 96], sizes = [2, 32], strides = [1, 1]} : vector<2x128xf32> to vector<2x32xf32>
    %204 = arith.mulf %201, %187 : vector<2x32xf32>
    %205 = arith.mulf %200, %202 : vector<2x32xf32>
    %206 = arith.addf %204, %205 : vector<2x32xf32>
    %207 = math.tanh %206 : vector<2x32xf32>
    %208 = arith.mulf %203, %207 : vector<2x32xf32>
    %209 = vector.extract_strided_slice %168 {offsets = [4, 0], sizes = [2, 128], strides = [1, 1]} : vector<16x128xf32> to vector<2x128xf32>
    %210 = arith.truncf %208 : vector<2x32xf32> to vector<2x32xbf16>
    %cst_38 = arith.constant dense<0.000000e+00> : vector<2x128xf32>
    %211 = tpu.matmul %210, %164, %cst_38 {dimension_numbers = #tpu.dot_dimension_numbers<[1], [0], [0], [1], [0, 0, 1, 1], [], []>} : vector<2x32xbf16>, vector<32x128xbf16>, vector<2x128xf32> -> vector<2x128xf32>
    %212 = arith.addf %209, %211 : vector<2x128xf32>
    %213 = arith.negf %212 : vector<2x128xf32>
    %214 = math.exp %213 : vector<2x128xf32>
    %cst_39 = arith.constant 1.000000e+00 : f32
    %215 = vector.broadcast %cst_39 : f32 to vector<2x128xf32>
    %216 = arith.addf %215, %214 : vector<2x128xf32>
    %217 = arith.divf %215, %216 : vector<2x128xf32>
    %218 = math.tanh %212 : vector<2x128xf32>
    %219 = vector.extract_strided_slice %217 {offsets = [0, 0], sizes = [2, 32], strides = [1, 1]} : vector<2x128xf32> to vector<2x32xf32>
    %220 = vector.extract_strided_slice %217 {offsets = [0, 32], sizes = [2, 32], strides = [1, 1]} : vector<2x128xf32> to vector<2x32xf32>
    %221 = vector.extract_strided_slice %218 {offsets = [0, 64], sizes = [2, 32], strides = [1, 1]} : vector<2x128xf32> to vector<2x32xf32>
    %222 = vector.extract_strided_slice %217 {offsets = [0, 96], sizes = [2, 32], strides = [1, 1]} : vector<2x128xf32> to vector<2x32xf32>
    %223 = arith.mulf %220, %206 : vector<2x32xf32>
    %224 = arith.mulf %219, %221 : vector<2x32xf32>
    %225 = arith.addf %223, %224 : vector<2x32xf32>
    %226 = math.tanh %225 : vector<2x32xf32>
    %227 = arith.mulf %222, %226 : vector<2x32xf32>
    %228 = vector.extract_strided_slice %168 {offsets = [6, 0], sizes = [2, 128], strides = [1, 1]} : vector<16x128xf32> to vector<2x128xf32>
    %229 = arith.truncf %227 : vector<2x32xf32> to vector<2x32xbf16>
    %cst_40 = arith.constant dense<0.000000e+00> : vector<2x128xf32>
    %230 = tpu.matmul %229, %164, %cst_40 {dimension_numbers = #tpu.dot_dimension_numbers<[1], [0], [0], [1], [0, 0, 1, 1], [], []>} : vector<2x32xbf16>, vector<32x128xbf16>, vector<2x128xf32> -> vector<2x128xf32>
    %231 = arith.addf %228, %230 : vector<2x128xf32>
    %232 = arith.negf %231 : vector<2x128xf32>
    %233 = math.exp %232 : vector<2x128xf32>
    %cst_41 = arith.constant 1.000000e+00 : f32
    %234 = vector.broadcast %cst_41 : f32 to vector<2x128xf32>
    %235 = arith.addf %234, %233 : vector<2x128xf32>
    %236 = arith.divf %234, %235 : vector<2x128xf32>
    %237 = math.tanh %231 : vector<2x128xf32>
    %238 = vector.extract_strided_slice %236 {offsets = [0, 0], sizes = [2, 32], strides = [1, 1]} : vector<2x128xf32> to vector<2x32xf32>
    %239 = vector.extract_strided_slice %236 {offsets = [0, 32], sizes = [2, 32], strides = [1, 1]} : vector<2x128xf32> to vector<2x32xf32>
    %240 = vector.extract_strided_slice %237 {offsets = [0, 64], sizes = [2, 32], strides = [1, 1]} : vector<2x128xf32> to vector<2x32xf32>
    %241 = vector.extract_strided_slice %236 {offsets = [0, 96], sizes = [2, 32], strides = [1, 1]} : vector<2x128xf32> to vector<2x32xf32>
    %242 = arith.mulf %239, %225 : vector<2x32xf32>
    %243 = arith.mulf %238, %240 : vector<2x32xf32>
    %244 = arith.addf %242, %243 : vector<2x32xf32>
    %245 = math.tanh %244 : vector<2x32xf32>
    %246 = arith.mulf %241, %245 : vector<2x32xf32>
    %247 = vector.extract_strided_slice %168 {offsets = [8, 0], sizes = [2, 128], strides = [1, 1]} : vector<16x128xf32> to vector<2x128xf32>
    %248 = arith.truncf %246 : vector<2x32xf32> to vector<2x32xbf16>
    %cst_42 = arith.constant dense<0.000000e+00> : vector<2x128xf32>
    %249 = tpu.matmul %248, %164, %cst_42 {dimension_numbers = #tpu.dot_dimension_numbers<[1], [0], [0], [1], [0, 0, 1, 1], [], []>} : vector<2x32xbf16>, vector<32x128xbf16>, vector<2x128xf32> -> vector<2x128xf32>
    %250 = arith.addf %247, %249 : vector<2x128xf32>
    %251 = arith.negf %250 : vector<2x128xf32>
    %252 = math.exp %251 : vector<2x128xf32>
    %cst_43 = arith.constant 1.000000e+00 : f32
    %253 = vector.broadcast %cst_43 : f32 to vector<2x128xf32>
    %254 = arith.addf %253, %252 : vector<2x128xf32>
    %255 = arith.divf %253, %254 : vector<2x128xf32>
    %256 = math.tanh %250 : vector<2x128xf32>
    %257 = vector.extract_strided_slice %255 {offsets = [0, 0], sizes = [2, 32], strides = [1, 1]} : vector<2x128xf32> to vector<2x32xf32>
    %258 = vector.extract_strided_slice %255 {offsets = [0, 32], sizes = [2, 32], strides = [1, 1]} : vector<2x128xf32> to vector<2x32xf32>
    %259 = vector.extract_strided_slice %256 {offsets = [0, 64], sizes = [2, 32], strides = [1, 1]} : vector<2x128xf32> to vector<2x32xf32>
    %260 = vector.extract_strided_slice %255 {offsets = [0, 96], sizes = [2, 32], strides = [1, 1]} : vector<2x128xf32> to vector<2x32xf32>
    %261 = arith.mulf %258, %244 : vector<2x32xf32>
    %262 = arith.mulf %257, %259 : vector<2x32xf32>
    %263 = arith.addf %261, %262 : vector<2x32xf32>
    %264 = math.tanh %263 : vector<2x32xf32>
    %265 = arith.mulf %260, %264 : vector<2x32xf32>
    %266 = vector.extract_strided_slice %168 {offsets = [10, 0], sizes = [2, 128], strides = [1, 1]} : vector<16x128xf32> to vector<2x128xf32>
    %267 = arith.truncf %265 : vector<2x32xf32> to vector<2x32xbf16>
    %cst_44 = arith.constant dense<0.000000e+00> : vector<2x128xf32>
    %268 = tpu.matmul %267, %164, %cst_44 {dimension_numbers = #tpu.dot_dimension_numbers<[1], [0], [0], [1], [0, 0, 1, 1], [], []>} : vector<2x32xbf16>, vector<32x128xbf16>, vector<2x128xf32> -> vector<2x128xf32>
    %269 = arith.addf %266, %268 : vector<2x128xf32>
    %270 = arith.negf %269 : vector<2x128xf32>
    %271 = math.exp %270 : vector<2x128xf32>
    %cst_45 = arith.constant 1.000000e+00 : f32
    %272 = vector.broadcast %cst_45 : f32 to vector<2x128xf32>
    %273 = arith.addf %272, %271 : vector<2x128xf32>
    %274 = arith.divf %272, %273 : vector<2x128xf32>
    %275 = math.tanh %269 : vector<2x128xf32>
    %276 = vector.extract_strided_slice %274 {offsets = [0, 0], sizes = [2, 32], strides = [1, 1]} : vector<2x128xf32> to vector<2x32xf32>
    %277 = vector.extract_strided_slice %274 {offsets = [0, 32], sizes = [2, 32], strides = [1, 1]} : vector<2x128xf32> to vector<2x32xf32>
    %278 = vector.extract_strided_slice %275 {offsets = [0, 64], sizes = [2, 32], strides = [1, 1]} : vector<2x128xf32> to vector<2x32xf32>
    %279 = vector.extract_strided_slice %274 {offsets = [0, 96], sizes = [2, 32], strides = [1, 1]} : vector<2x128xf32> to vector<2x32xf32>
    %280 = arith.mulf %277, %263 : vector<2x32xf32>
    %281 = arith.mulf %276, %278 : vector<2x32xf32>
    %282 = arith.addf %280, %281 : vector<2x32xf32>
    %283 = math.tanh %282 : vector<2x32xf32>
    %284 = arith.mulf %279, %283 : vector<2x32xf32>
    %285 = vector.extract_strided_slice %168 {offsets = [12, 0], sizes = [2, 128], strides = [1, 1]} : vector<16x128xf32> to vector<2x128xf32>
    %286 = arith.truncf %284 : vector<2x32xf32> to vector<2x32xbf16>
    %cst_46 = arith.constant dense<0.000000e+00> : vector<2x128xf32>
    %287 = tpu.matmul %286, %164, %cst_46 {dimension_numbers = #tpu.dot_dimension_numbers<[1], [0], [0], [1], [0, 0, 1, 1], [], []>} : vector<2x32xbf16>, vector<32x128xbf16>, vector<2x128xf32> -> vector<2x128xf32>
    %288 = arith.addf %285, %287 : vector<2x128xf32>
    %289 = arith.negf %288 : vector<2x128xf32>
    %290 = math.exp %289 : vector<2x128xf32>
    %cst_47 = arith.constant 1.000000e+00 : f32
    %291 = vector.broadcast %cst_47 : f32 to vector<2x128xf32>
    %292 = arith.addf %291, %290 : vector<2x128xf32>
    %293 = arith.divf %291, %292 : vector<2x128xf32>
    %294 = math.tanh %288 : vector<2x128xf32>
    %295 = vector.extract_strided_slice %293 {offsets = [0, 0], sizes = [2, 32], strides = [1, 1]} : vector<2x128xf32> to vector<2x32xf32>
    %296 = vector.extract_strided_slice %293 {offsets = [0, 32], sizes = [2, 32], strides = [1, 1]} : vector<2x128xf32> to vector<2x32xf32>
    %297 = vector.extract_strided_slice %294 {offsets = [0, 64], sizes = [2, 32], strides = [1, 1]} : vector<2x128xf32> to vector<2x32xf32>
    %298 = vector.extract_strided_slice %293 {offsets = [0, 96], sizes = [2, 32], strides = [1, 1]} : vector<2x128xf32> to vector<2x32xf32>
    %299 = arith.mulf %296, %282 : vector<2x32xf32>
    %300 = arith.mulf %295, %297 : vector<2x32xf32>
    %301 = arith.addf %299, %300 : vector<2x32xf32>
    %302 = math.tanh %301 : vector<2x32xf32>
    %303 = arith.mulf %298, %302 : vector<2x32xf32>
    %304 = vector.extract_strided_slice %168 {offsets = [14, 0], sizes = [2, 128], strides = [1, 1]} : vector<16x128xf32> to vector<2x128xf32>
    %305 = arith.truncf %303 : vector<2x32xf32> to vector<2x32xbf16>
    %cst_48 = arith.constant dense<0.000000e+00> : vector<2x128xf32>
    %306 = tpu.matmul %305, %164, %cst_48 {dimension_numbers = #tpu.dot_dimension_numbers<[1], [0], [0], [1], [0, 0, 1, 1], [], []>} : vector<2x32xbf16>, vector<32x128xbf16>, vector<2x128xf32> -> vector<2x128xf32>
    %307 = arith.addf %304, %306 : vector<2x128xf32>
    %308 = arith.negf %307 : vector<2x128xf32>
    %309 = math.exp %308 : vector<2x128xf32>
    %cst_49 = arith.constant 1.000000e+00 : f32
    %310 = vector.broadcast %cst_49 : f32 to vector<2x128xf32>
    %311 = arith.addf %310, %309 : vector<2x128xf32>
    %312 = arith.divf %310, %311 : vector<2x128xf32>
    %313 = math.tanh %307 : vector<2x128xf32>
    %314 = vector.extract_strided_slice %312 {offsets = [0, 0], sizes = [2, 32], strides = [1, 1]} : vector<2x128xf32> to vector<2x32xf32>
    %315 = vector.extract_strided_slice %312 {offsets = [0, 32], sizes = [2, 32], strides = [1, 1]} : vector<2x128xf32> to vector<2x32xf32>
    %316 = vector.extract_strided_slice %313 {offsets = [0, 64], sizes = [2, 32], strides = [1, 1]} : vector<2x128xf32> to vector<2x32xf32>
    %317 = vector.extract_strided_slice %312 {offsets = [0, 96], sizes = [2, 32], strides = [1, 1]} : vector<2x128xf32> to vector<2x32xf32>
    %318 = arith.mulf %315, %301 : vector<2x32xf32>
    %319 = arith.mulf %314, %316 : vector<2x32xf32>
    %320 = arith.addf %318, %319 : vector<2x32xf32>
    %321 = math.tanh %320 : vector<2x32xf32>
    %322 = arith.mulf %317, %321 : vector<2x32xf32>
    %c0_50 = arith.constant 0 : index
    %c0_51 = arith.constant 0 : index
    %323 = vector.load %arg7[%c0_50, %c0_51] : memref<1x32xf32, #tpu.memory_space<vmem>>, vector<1x32xf32>
    %324 = vector.broadcast %323 : vector<1x32xf32> to vector<2x32xf32>
    %325 = arith.mulf %322, %324 : vector<2x32xf32>
    %cst_52 = arith.constant dense<0.000000e+00> : vector<2xf32>
    %326 = vector.multi_reduction <add>, %325, %cst_52 [1] : vector<2x32xf32> to vector<2xf32>
    %327 = vector.shape_cast %326 : vector<2xf32> to vector<2x1xf32>
    %c0_53 = arith.constant 0 : index
    %c0_54 = arith.constant 0 : index
    %328 = vector.load %arg8[%c0_53, %c0_54] : memref<1x1xf32, #tpu.memory_space<vmem>>, vector<1x1xf32>
    %329 = vector.broadcast %328 : vector<1x1xf32> to vector<2x1xf32>
    %330 = arith.addf %327, %329 : vector<2x1xf32>
    %331 = arith.negf %330 : vector<2x1xf32>
    %332 = math.exp %331 : vector<2x1xf32>
    %cst_55 = arith.constant 1.000000e+00 : f32
    %333 = vector.broadcast %cst_55 : f32 to vector<2x1xf32>
    %334 = arith.addf %333, %332 : vector<2x1xf32>
    %335 = arith.divf %333, %334 : vector<2x1xf32>
    %c0_56 = arith.constant 0 : index
    %c0_57 = arith.constant 0 : index
    %336 = vector.load %arg9[%c0_56, %c0_57] : memref<2x1xf32, #tpu.memory_space<vmem>>, vector<2x1xf32>
    tpu.vector_store %arg9[%c0_56, %c0_57], %335 {strides = array<i32>} : memref<2x1xf32, #tpu.memory_space<vmem>>, vector<2x1xf32>,
    return
  }
}

</mosaic_0001>

<llo_original>
// kernel: net_forward.1
$region0: #{net_forward.1}
  #allocation0 [shape = 'u32[]', space=smem, size = 0x4, offset = 0x4, fixed_abs, tag = 'smem constant byte address 0x4 - core index']
  #allocation1 [shape = 'u32[72,128]{1,0:T(1,128)}', space=vmem, size = 0x9000, scoped, tag = 'internal scratch']
  #allocation2 [shape = 'f32[1,1]{1,0:T(1,128)S(1)}', space=vmem, size = 0x200, scoped, tag = 'scoped memory for net_forward.1']
  %s0 = inlined_call_operand.vmem [shape: bf16[16,32], index: 0, kind: input, shape index: {}]
  %s1 = inlined_call_operand.vmem [shape: bf16[32,128], index: 1, kind: input, shape index: {}]
  %s2 = inlined_call_operand.vmem [shape: bf16[32,128], index: 2, kind: input, shape index: {}]
  %s3 = inlined_call_operand.vmem [shape: f32[1,128], index: 3, kind: input, shape index: {}]
  %s4 = inlined_call_operand.vmem [shape: bf16[32,128], index: 4, kind: input, shape index: {}]
  %s5 = inlined_call_operand.vmem [shape: bf16[32,128], index: 5, kind: input, shape index: {}]
  %s6 = inlined_call_operand.vmem [shape: f32[1,128], index: 6, kind: input, shape index: {}]
  %s7 = inlined_call_operand.vmem [shape: f32[1,32], index: 7, kind: input, shape index: {}]
  %s8 = inlined_call_operand.<no memory space> [shape: f32[1,1], index: 8, kind: input, shape index: {}]
  %s9 = inlined_call_operand.vmem [shape: f32[2,1], index: 9, kind: output, shape index: {}]
  %s10 = sld [smem:[#allocation0]]
  $region46: #{net_forward.1} parent=0
    _
  %s12 = ssub.s32 1, %s10
  %s13 = scalar_select 0, %s12, %s10
  %v14 = vstv %s8
  %15 = vst [vmem:[#allocation2] sm:$0x1] %v14
  // Predicated region
  $region2: #{net_forward.1} parent=0 // pred_check
    _
  $region3: #{net_forward.1} parent=0 // pred_check_branch
    %17 = sbr.rel (0) target = $region5
  $region4: #{net_forward.1} parent=0 // pred_region
    _
  $region5: #{net_forward.1} parent=0 // pred_fallthru
    _
  // Predicated region
  $region6: #{net_forward.1} parent=0 // pred_check
    _
  $region7: #{net_forward.1} parent=0 // pred_check_branch
    %19 = sbr.rel (0) target = $region9
  $region8: #{net_forward.1} parent=0 // pred_region
    _
  $region9: #{net_forward.1} parent=0 // pred_fallthru
    _
  // Predicated region
  $region10: #{net_forward.1} parent=0 // pred_check
    _
  $region11: #{net_forward.1} parent=0 // pred_check_branch
    %21 = sbr.rel (0) target = $region13
  $region12: #{net_forward.1} parent=0 // pred_region
    _
  $region13: #{net_forward.1} parent=0 // pred_fallthru
    _
  // Predicated region
  $region14: #{net_forward.1} parent=0 // pred_check
    _
  $region15: #{net_forward.1} parent=0 // pred_check_branch
    %23 = sbr.rel (0) target = $region17
  $region16: #{net_forward.1} parent=0 // pred_region
    _
  $region17: #{net_forward.1} parent=0 // pred_fallthru
    _
  // Predicated region
  $region18: #{net_forward.1} parent=0 // pred_check
    _
  $region19: #{net_forward.1} parent=0 // pred_check_branch
    %25 = sbr.rel (0) target = $region21
  $region20: #{net_forward.1} parent=0 // pred_region
    _
  $region21: #{net_forward.1} parent=0 // pred_fallthru
    _
  // Predicated region
  $region22: #{net_forward.1} parent=0 // pred_check
    _
  $region23: #{net_forward.1} parent=0 // pred_check_branch
    %27 = sbr.rel (0) target = $region25
  $region24: #{net_forward.1} parent=0 // pred_region
    _
  $region25: #{net_forward.1} parent=0 // pred_fallthru
    _
  // Predicated region
  $region26: #{net_forward.1} parent=0 // pred_check
    _
  $region27: #{net_forward.1} parent=0 // pred_check_branch
    %29 = sbr.rel (0) target = $region29
  $region28: #{net_forward.1} parent=0 // pred_region
    _
  $region29: #{net_forward.1} parent=0 // pred_fallthru
    _
  // Predicated region
  $region30: #{net_forward.1} parent=0 // pred_check
    _
  $region31: #{net_forward.1} parent=0 // pred_check_branch
    %31 = sbr.rel (0) target = $region33
  $region32: #{net_forward.1} parent=0 // pred_region
    _
  $region33: #{net_forward.1} parent=0 // pred_fallthru
    _
  // Predicated region
  $region34: #{net_forward.1} parent=0 // pred_check
    _
  $region35: #{net_forward.1} parent=0 // pred_check_branch
    %33 = sbr.rel (0) target = $region37
  $region36: #{net_forward.1} parent=0 // pred_region
    _
  $region37: #{net_forward.1} parent=0 // pred_fallthru
    _
  %v35 = vld [vmem:[%s0] sm:$0xf]
  %v36 = vld [vmem:[%s0 + $0x4] sm:$0xf]
  %v37 = vld [vmem:[%s1] sm:$0xf]
  %v38 = vld [vmem:[%s1 + $0x4] sm:$0xf]
  %v39 = vld [vmem:[%s1 + $0x8] sm:$0xf]
  %v40 = vld [vmem:[%s1 + $0xc] sm:$0xf]
  %v41 = vld [vmem:[%s2] sm:$0xf]
  %v42 = vld [vmem:[%s2 + $0x4] sm:$0xf]
  %v43 = vld [vmem:[%s2 + $0x8] sm:$0xf]
  %v44 = vld [vmem:[%s2 + $0xc] sm:$0xf]
  %v45 = vld [vmem:[%s3] sm:$0x1]
  %v47 = vperm.slane %v45, 0
  %v51 = vunpack.c.l.b16 %v35
  %v52 = vunpack.c.l.b16 %v36
  %v53 = vpack.c.b16 %v52, %v51
  %v58 = vunpack.c.l.b16 %v37
  %v59 = vunpack.c.l.b16 %v38
  %v60 = vunpack.c.l.b16 %v39
  %v61 = vunpack.c.l.b16 %v40
  %v62 = vpack.c.b16 %v59, %v58
  %v63 = vpack.c.b16 %v61, %v60
  %vm66 = vcmask 261120
  %v68 = vsel %vm66, %v53, 0
  %70 = vmatpush.bf16.msra.mxu0 0
  %71 = vmatpush.bf16.msra.mxu0 0
  %72 = vmatpush.bf16.msra.mxu0 0
  %73 = vmatpush.bf16.msra.mxu0 0
  %74 = vmatpush.bf16.msra.mxu0 0
  %75 = vmatpush.bf16.msra.mxu0 0
  %76 = vmatpush.bf16.msra.mxu0 %v63
  %77 = vmatpush.bf16.msra.mxu0 %v62
  %78 = vmatmul.bf16.gmra.mxu0 %v68
  %v79 = vpop.f32.mrf.mxu0
  %v80 = vadd.f32 %v47, %v79
  %v81 = vpop.f32.mrf.mxu0
  %v82 = vadd.f32 %v47, %v81
  %83 = vdwg.mxu0
  %v88 = vunpack.c.l.b16 %v41
  %v89 = vunpack.c.l.b16 %v42
  %v90 = vunpack.c.l.b16 %v43
  %v91 = vunpack.c.l.b16 %v44
  %v92 = vpack.c.b16 %v89, %v88
  %v93 = vpack.c.b16 %v91, %v90
  %v97 = vsel %vm66, 0, 0
  %99 = vmatpush.bf16.msra.mxu0 0
  %100 = vmatpush.bf16.msra.mxu0 0
  %101 = vmatpush.bf16.msra.mxu0 0
  %102 = vmatpush.bf16.msra.mxu0 0
  %103 = vmatpush.bf16.msra.mxu0 0
  %104 = vmatpush.bf16.msra.mxu0 0
  %105 = vmatpush.bf16.msra.mxu0 %v93
  %106 = vmatpush.bf16.msra.mxu0 %v92
  %107 = vmatmul.bf16.gmra.mxu0 %v97
  %v108 = vpop.f32.mrf.mxu0
  %v109 = vadd.f32 0.0, %v108
  %v110 = vpop.f32.mrf.mxu0
  %111 = vdwg.mxu0
  %v112 = vadd.f32 %v80, %v109
  %v113 = vxor.u32 %v112, 2147483648
  %v114 = vmul.f32 %v113, 1.442695
  %v115 = vpow.pop %v114
  %v116 = vadd.f32 %v115, 1.0
  %v117 = vrcp.pop %v116
  %v118 = vmul.f32 %v116, %v117
  %v119 = vsub.f32 1.0, %v118
  %v120 = vmul.f32 %v117, %v119
  %v121 = vadd.f32 %v117, %v120
  %vm122 = vweird.f32 %v116
  %vm123 = vweird.f32 %v117
  %vm124 = vmor %vm122, %vm123
  %v125 = vsel %vm124, %v117, %v121
  %v126 = vand.u32 2147483647, %v116
  %vm127 = vcmp.eq.f32.partialorder %v126, 8.507059e+37
  %v128 = vand.u32 %v116, 2147483648
  %v129 = vor.u32 1.1754944e-38, %v128
  %v130 = vsel %vm127, %v129, %v125
  %v131 = vmul.f32 1.0, %v130
  %v132 = vtanh.pop %v112
  %v133 = vmul.f32 %v131, 0.0
  %135 = vrot.lane.b32.xlu0 %v132, 64
  %v136 = vpop.permute.xlu0 %135
  %v138 = vmul.f32 %v131, %v136
  %140 = vrot.lane.b32.xlu0 %v138, 32
  %v141 = vpop.permute.xlu0 %140
  %v143 = vadd.f32 %v133, %v141
  %v144 = vtanh.pop %v143
  %146 = vrot.lane.b32.xlu0 %v144, 64
  %v147 = vpop.permute.xlu0 %146
  %v149 = vmul.f32 %v131, %v147
  %v150 = vpack.c.bf16 %v149, %v149
  %152 = vrot.lane.b32.xlu0 %v150, 32
  %v153 = vpop.permute.xlu0 %152
  %v155 = vsel %vm66, %v153, 0
  %157 = vmatpush.bf16.msra.mxu0 0
  %158 = vmatpush.bf16.msra.mxu0 0
  %159 = vmatpush.bf16.msra.mxu0 0
  %160 = vmatpush.bf16.msra.mxu0 0
  %161 = vmatpush.bf16.msra.mxu0 0
  %162 = vmatpush.bf16.msra.mxu0 0
  %163 = vmatpush.bf16.msra.mxu0 %v93
  %164 = vmatpush.bf16.msra.mxu0 %v92
  %165 = vmatmul.bf16.gmra.mxu0 %v155
  %v166 = vpop.f32.mrf.mxu0
  %v167 = vadd.f32 0.0, %v166
  %v168 = vpop.f32.mrf.mxu0
  %169 = vdwg.mxu0
  %v171 = vrot.slane %v167, 6
  %v173 = vadd.f32 %v80, %v171
  %v174 = vxor.u32 %v173, 2147483648
  %v175 = vmul.f32 %v174, 1.442695
  %v176 = vpow.pop %v175
  %v177 = vadd.f32 %v176, 1.0
  %v178 = vrcp.pop %v177
  %v179 = vmul.f32 %v177, %v178
  %v180 = vsub.f32 1.0, %v179
  %v181 = vmul.f32 %v178, %v180
  %v182 = vadd.f32 %v178, %v181
  %vm183 = vweird.f32 %v177
  %vm184 = vweird.f32 %v178
  %vm185 = vmor %vm183, %vm184
  %v186 = vsel %vm185, %v178, %v182
  %v187 = vand.u32 2147483647, %v177
  %vm188 = vcmp.eq.f32.partialorder %v187, 8.507059e+37
  %v189 = vand.u32 %v177, 2147483648
  %v190 = vor.u32 1.1754944e-38, %v189
  %v191 = vsel %vm188, %v190, %v186
  %v192 = vmul.f32 1.0, %v191
  %v193 = vtanh.pop %v173
  %v195 = vrot.slane %v143, 6
  %v197 = vmul.f32 %v192, %v195
  %199 = vrot.lane.b32.xlu0 %v193, 64
  %v200 = vpop.permute.xlu0 %199
  %v202 = vmul.f32 %v192, %v200
  %204 = vrot.lane.b32.xlu0 %v202, 32
  %v205 = vpop.permute.xlu0 %204
  %v207 = vadd.f32 %v197, %v205
  %v208 = vtanh.pop %v207
  %210 = vrot.lane.b32.xlu0 %v208, 64
  %v211 = vpop.permute.xlu0 %210
  %v213 = vmul.f32 %v192, %v211
  %v214 = vpack.c.bf16 %v213, %v213
  %v216 = vrot.slane %v214, 1
  %217 = vrot.lane.b32.xlu0 %v216, 32
  %v218 = vpop.permute.xlu0 %217
  %v220 = vsel %vm66, %v218, 0
  %222 = vmatpush.bf16.msra.mxu0 0
  %223 = vmatpush.bf16.msra.mxu0 0
  %224 = vmatpush.bf16.msra.mxu0 0
  %225 = vmatpush.bf16.msra.mxu0 0
  %226 = vmatpush.bf16.msra.mxu0 0
  %227 = vmatpush.bf16.msra.mxu0 0
  %228 = vmatpush.bf16.msra.mxu0 %v93
  %229 = vmatpush.bf16.msra.mxu0 %v92
  %230 = vmatmul.bf16.gmra.mxu0 %v220
  %v231 = vpop.f32.mrf.mxu0
  %v232 = vadd.f32 0.0, %v231
  %v233 = vpop.f32.mrf.mxu0
  %234 = vdwg.mxu0
  %v236 = vrot.slane %v232, 4
  %v238 = vadd.f32 %v80, %v236
  %v239 = vxor.u32 %v238, 2147483648
  %v240 = vmul.f32 %v239, 1.442695
  %v241 = vpow.pop %v240
  %v242 = vadd.f32 %v241, 1.0
  %v243 = vrcp.pop %v242
  %v244 = vmul.f32 %v242, %v243
  %v245 = vsub.f32 1.0, %v244
  %v246 = vmul.f32 %v243, %v245
  %v247 = vadd.f32 %v243, %v246
  %vm248 = vweird.f32 %v242
  %vm249 = vweird.f32 %v243
  %vm250 = vmor %vm248, %vm249
  %v251 = vsel %vm250, %v243, %v247
  %v252 = vand.u32 2147483647, %v242
  %vm253 = vcmp.eq.f32.partialorder %v252, 8.507059e+37
  %v254 = vand.u32 %v242, 2147483648
  %v255 = vor.u32 1.1754944e-38, %v254
  %v256 = vsel %vm253, %v255, %v251
  %v257 = vmul.f32 1.0, %v256
  %v258 = vtanh.pop %v238
  %v260 = vrot.slane %v207, 6
  %v262 = vmul.f32 %v257, %v260
  %264 = vrot.lane.b32.xlu0 %v258, 64
  %v265 = vpop.permute.xlu0 %264
  %v267 = vmul.f32 %v257, %v265
  %269 = vrot.lane.b32.xlu0 %v267, 32
  %v270 = vpop.permute.xlu0 %269
  %v272 = vadd.f32 %v262, %v270
  %v273 = vtanh.pop %v272
  %275 = vrot.lane.b32.xlu0 %v273, 64
  %v276 = vpop.permute.xlu0 %275
  %v278 = vmul.f32 %v257, %v276
  %v279 = vpack.c.bf16 %v278, %v278
  %v281 = vrot.slane %v279, 2
  %282 = vrot.lane.b32.xlu0 %v281, 32
  %v283 = vpop.permute.xlu0 %282
  %v285 = vsel %vm66, %v283, 0
  %287 = vmatpush.bf16.msra.mxu0 0
  %288 = vmatpush.bf16.msra.mxu0 0
  %289 = vmatpush.bf16.msra.mxu0 0
  %290 = vmatpush.bf16.msra.mxu0 0
  %291 = vmatpush.bf16.msra.mxu0 0
  %292 = vmatpush.bf16.msra.mxu0 0
  %293 = vmatpush.bf16.msra.mxu0 %v93
  %294 = vmatpush.bf16.msra.mxu0 %v92
  %295 = vmatmul.bf16.gmra.mxu0 %v285
  %v296 = vpop.f32.mrf.mxu0
  %v297 = vadd.f32 0.0, %v296
  %v298 = vpop.f32.mrf.mxu0
  %299 = vdwg.mxu0
  %v301 = vrot.slane %v297, 2
  %v303 = vadd.f32 %v80, %v301
  %v304 = vxor.u32 %v303, 2147483648
  %v305 = vmul.f32 %v304, 1.442695
  %v306 = vpow.pop %v305
  %v307 = vadd.f32 %v306, 1.0
  %v308 = vrcp.pop %v307
  %v309 = vmul.f32 %v307, %v308
  %v310 = vsub.f32 1.0, %v309
  %v311 = vmul.f32 %v308, %v310
  %v312 = vadd.f32 %v308, %v311
  %vm313 = vweird.f32 %v307
  %vm314 = vweird.f32 %v308
  %vm315 = vmor %vm313, %vm314
  %v316 = vsel %vm315, %v308, %v312
  %v317 = vand.u32 2147483647, %v307
  %vm318 = vcmp.eq.f32.partialorder %v317, 8.507059e+37
  %v319 = vand.u32 %v307, 2147483648
  %v320 = vor.u32 1.1754944e-38, %v319
  %v321 = vsel %vm318, %v320, %v316
  %v322 = vmul.f32 1.0, %v321
  %v323 = vtanh.pop %v303
  %v325 = vrot.slane %v272, 6
  %v327 = vmul.f32 %v322, %v325
  %329 = vrot.lane.b32.xlu0 %v323, 64
  %v330 = vpop.permute.xlu0 %329
  %v332 = vmul.f32 %v322, %v330
  %334 = vrot.lane.b32.xlu0 %v332, 32
  %v335 = vpop.permute.xlu0 %334
  %v337 = vadd.f32 %v327, %v335
  %v338 = vtanh.pop %v337
  %340 = vrot.lane.b32.xlu0 %v338, 64
  %v341 = vpop.permute.xlu0 %340
  %v343 = vmul.f32 %v322, %v341
  %v344 = vpack.c.bf16 %v343, %v343
  %v346 = vrot.slane %v344, 3
  %347 = vrot.lane.b32.xlu0 %v346, 32
  %v348 = vpop.permute.xlu0 %347
  %v350 = vsel %vm66, %v348, 0
  %352 = vmatpush.bf16.msra.mxu0 0
  %353 = vmatpush.bf16.msra.mxu0 0
  %354 = vmatpush.bf16.msra.mxu0 0
  %355 = vmatpush.bf16.msra.mxu0 0
  %356 = vmatpush.bf16.msra.mxu0 0
  %357 = vmatpush.bf16.msra.mxu0 0
  %358 = vmatpush.bf16.msra.mxu0 %v93
  %359 = vmatpush.bf16.msra.mxu0 %v92
  %360 = vmatmul.bf16.gmra.mxu0 %v350
  %v361 = vpop.f32.mrf.mxu0
  %v362 = vadd.f32 0.0, %v361
  %v363 = vpop.f32.mrf.mxu0
  %364 = vdwg.mxu0
  %v365 = vadd.f32 %v82, %v362
  %v366 = vxor.u32 %v365, 2147483648
  %v367 = vmul.f32 %v366, 1.442695
  %v368 = vpow.pop %v367
  %v369 = vadd.f32 %v368, 1.0
  %v370 = vrcp.pop %v369
  %v371 = vmul.f32 %v369, %v370
  %v372 = vsub.f32 1.0, %v371
  %v373 = vmul.f32 %v370, %v372
  %v374 = vadd.f32 %v370, %v373
  %vm375 = vweird.f32 %v369
  %vm376 = vweird.f32 %v370
  %vm377 = vmor %vm375, %vm376
  %v378 = vsel %vm377, %v370, %v374
  %v379 = vand.u32 2147483647, %v369
  %vm380 = vcmp.eq.f32.partialorder %v379, 8.507059e+37
  %v381 = vand.u32 %v369, 2147483648
  %v382 = vor.u32 1.1754944e-38, %v381
  %v383 = vsel %vm380, %v382, %v378
  %v384 = vmul.f32 1.0, %v383
  %v385 = vtanh.pop %v365
  %v387 = vrot.slane %v337, 6
  %v389 = vmul.f32 %v384, %v387
  %391 = vrot.lane.b32.xlu0 %v385, 64
  %v392 = vpop.permute.xlu0 %391
  %v394 = vmul.f32 %v384, %v392
  %396 = vrot.lane.b32.xlu0 %v394, 32
  %v397 = vpop.permute.xlu0 %396
  %v399 = vadd.f32 %v389, %v397
  %v400 = vtanh.pop %v399
  %402 = vrot.lane.b32.xlu0 %v400, 64
  %v403 = vpop.permute.xlu0 %402
  %v405 = vmul.f32 %v384, %v403
  %v406 = vpack.c.bf16 %v405, %v405
  %408 = vrot.lane.b32.xlu0 %v406, 32
  %v409 = vpop.permute.xlu0 %408
  %v411 = vsel %vm66, %v409, 0
  %413 = vmatpush.bf16.msra.mxu0 0
  %414 = vmatpush.bf16.msra.mxu0 0
  %415 = vmatpush.bf16.msra.mxu0 0
  %416 = vmatpush.bf16.msra.mxu0 0
  %417 = vmatpush.bf16.msra.mxu0 0
  %418 = vmatpush.bf16.msra.mxu0 0
  %419 = vmatpush.bf16.msra.mxu0 %v93
  %420 = vmatpush.bf16.msra.mxu0 %v92
  %421 = vmatmul.bf16.gmra.mxu0 %v411
  %v422 = vpop.f32.mrf.mxu0
  %v423 = vadd.f32 0.0, %v422
  %v424 = vpop.f32.mrf.mxu0
  %425 = vdwg.mxu0
  %v427 = vrot.slane %v423, 6
  %v429 = vadd.f32 %v82, %v427
  %v430 = vxor.u32 %v429, 2147483648
  %v431 = vmul.f32 %v430, 1.442695
  %v432 = vpow.pop %v431
  %v433 = vadd.f32 %v432, 1.0
  %v434 = vrcp.pop %v433
  %v435 = vmul.f32 %v433, %v434
  %v436 = vsub.f32 1.0, %v435
  %v437 = vmul.f32 %v434, %v436
  %v438 = vadd.f32 %v434, %v437
  %vm439 = vweird.f32 %v433
  %vm440 = vweird.f32 %v434
  %vm441 = vmor %vm439, %vm440
  %v442 = vsel %vm441, %v434, %v438
  %v443 = vand.u32 2147483647, %v433
  %vm444 = vcmp.eq.f32.partialorder %v443, 8.507059e+37
  %v445 = vand.u32 %v433, 2147483648
  %v446 = vor.u32 1.1754944e-38, %v445
  %v447 = vsel %vm444, %v446, %v442
  %v448 = vmul.f32 1.0, %v447
  %v449 = vtanh.pop %v429
  %v451 = vrot.slane %v399, 6
  %v453 = vmul.f32 %v448, %v451
  %455 = vrot.lane.b32.xlu0 %v449, 64
  %v456 = vpop.permute.xlu0 %455
  %v458 = vmul.f32 %v448, %v456
  %460 = vrot.lane.b32.xlu0 %v458, 32
  %v461 = vpop.permute.xlu0 %460
  %v463 = vadd.f32 %v453, %v461
  %v464 = vtanh.pop %v463
  %466 = vrot.lane.b32.xlu0 %v464, 64
  %v467 = vpop.permute.xlu0 %466
  %v469 = vmul.f32 %v448, %v467
  %v470 = vpack.c.bf16 %v469, %v469
  %v472 = vrot.slane %v470, 1
  %473 = vrot.lane.b32.xlu0 %v472, 32
  %v474 = vpop.permute.xlu0 %473
  %v476 = vsel %vm66, %v474, 0
  %478 = vmatpush.bf16.msra.mxu0 0
  %479 = vmatpush.bf16.msra.mxu0 0
  %480 = vmatpush.bf16.msra.mxu0 0
  %481 = vmatpush.bf16.msra.mxu0 0
  %482 = vmatpush.bf16.msra.mxu0 0
  %483 = vmatpush.bf16.msra.mxu0 0
  %484 = vmatpush.bf16.msra.mxu0 %v93
  %485 = vmatpush.bf16.msra.mxu0 %v92
  %486 = vmatmul.bf16.gmra.mxu0 %v476
  %v487 = vpop.f32.mrf.mxu0
  %v488 = vadd.f32 0.0, %v487
  %v489 = vpop.f32.mrf.mxu0
  %490 = vdwg.mxu0
  %v492 = vrot.slane %v488, 4
  %v494 = vadd.f32 %v82, %v492
  %v495 = vxor.u32 %v494, 2147483648
  %v496 = vmul.f32 %v495, 1.442695
  %v497 = vpow.pop %v496
  %v498 = vadd.f32 %v497, 1.0
  %v499 = vrcp.pop %v498
  %v500 = vmul.f32 %v498, %v499
  %v501 = vsub.f32 1.0, %v500
  %v502 = vmul.f32 %v499, %v501
  %v503 = vadd.f32 %v499, %v502
  %vm504 = vweird.f32 %v498
  %vm505 = vweird.f32 %v499
  %vm506 = vmor %vm504, %vm505
  %v507 = vsel %vm506, %v499, %v503
  %v508 = vand.u32 2147483647, %v498
  %vm509 = vcmp.eq.f32.partialorder %v508, 8.507059e+37
  %v510 = vand.u32 %v498, 2147483648
  %v511 = vor.u32 1.1754944e-38, %v510
  %v512 = vsel %vm509, %v511, %v507
  %v513 = vmul.f32 1.0, %v512
  %v514 = vtanh.pop %v494
  %v516 = vrot.slane %v463, 6
  %v518 = vmul.f32 %v513, %v516
  %520 = vrot.lane.b32.xlu0 %v514, 64
  %v521 = vpop.permute.xlu0 %520
  %v523 = vmul.f32 %v513, %v521
  %525 = vrot.lane.b32.xlu0 %v523, 32
  %v526 = vpop.permute.xlu0 %525
  %v528 = vadd.f32 %v518, %v526
  %v529 = vtanh.pop %v528
  %531 = vrot.lane.b32.xlu0 %v529, 64
  %v532 = vpop.permute.xlu0 %531
  %v534 = vmul.f32 %v513, %v532
  %v535 = vpack.c.bf16 %v534, %v534
  %v537 = vrot.slane %v535, 2
  %538 = vrot.lane.b32.xlu0 %v537, 32
  %v539 = vpop.permute.xlu0 %538
  %v541 = vsel %vm66, %v539, 0
  %543 = vmatpush.bf16.msra.mxu0 0
  %544 = vmatpush.bf16.msra.mxu0 0
  %545 = vmatpush.bf16.msra.mxu0 0
  %546 = vmatpush.bf16.msra.mxu0 0
  %547 = vmatpush.bf16.msra.mxu0 0
  %548 = vmatpush.bf16.msra.mxu0 0
  %549 = vmatpush.bf16.msra.mxu0 %v93
  %550 = vmatpush.bf16.msra.mxu0 %v92
  %551 = vmatmul.bf16.gmra.mxu0 %v541
  %v552 = vpop.f32.mrf.mxu0
  %v553 = vadd.f32 0.0, %v552
  %v554 = vpop.f32.mrf.mxu0
  %555 = vdwg.mxu0
  %v557 = vrot.slane %v553, 2
  %v559 = vadd.f32 %v82, %v557
  %v560 = vxor.u32 %v559, 2147483648
  %v561 = vmul.f32 %v560, 1.442695
  %v562 = vpow.pop %v561
  %v563 = vadd.f32 %v562, 1.0
  %v564 = vrcp.pop %v563
  %v565 = vmul.f32 %v563, %v564
  %v566 = vsub.f32 1.0, %v565
  %v567 = vmul.f32 %v564, %v566
  %v568 = vadd.f32 %v564, %v567
  %vm569 = vweird.f32 %v563
  %vm570 = vweird.f32 %v564
  %vm571 = vmor %vm569, %vm570
  %v572 = vsel %vm571, %v564, %v568
  %v573 = vand.u32 2147483647, %v563
  %vm574 = vcmp.eq.f32.partialorder %v573, 8.507059e+37
  %v575 = vand.u32 %v563, 2147483648
  %v576 = vor.u32 1.1754944e-38, %v575
  %v577 = vsel %vm574, %v576, %v572
  %v578 = vmul.f32 1.0, %v577
  %v579 = vtanh.pop %v559
  %v581 = vrot.slane %v528, 6
  %v583 = vmul.f32 %v578, %v581
  %585 = vrot.lane.b32.xlu0 %v579, 64
  %v586 = vpop.permute.xlu0 %585
  %v588 = vmul.f32 %v578, %v586
  %590 = vrot.lane.b32.xlu0 %v588, 32
  %v591 = vpop.permute.xlu0 %590
  %v593 = vadd.f32 %v583, %v591
  %v594 = vtanh.pop %v593
  %596 = vrot.lane.b32.xlu0 %v594, 64
  %v597 = vpop.permute.xlu0 %596
  %v599 = vmul.f32 %v578, %v597
  %vm600 = vcmask 1041408
  %v601 = vsel %vm600, %v149, %v213
  %vm602 = vcmask 1043456
  %v603 = vsel %vm602, %v601, %v278
  %vm604 = vcmask 1045504
  %v605 = vsel %vm604, %v603, %v343
  %v606 = vsel %vm600, %v405, %v469
  %v607 = vsel %vm602, %v606, %v534
  %v608 = vsel %vm604, %v607, %v599
  %v609 = vpack.c.bf16 %v608, %v605
  %v610 = vld [vmem:[%s4] sm:$0xf]
  %v611 = vld [vmem:[%s4 + $0x4] sm:$0xf]
  %v612 = vld [vmem:[%s4 + $0x8] sm:$0xf]
  %v613 = vld [vmem:[%s4 + $0xc] sm:$0xf]
  %v614 = vld [vmem:[%s5] sm:$0xf]
  %v615 = vld [vmem:[%s5 + $0x4] sm:$0xf]
  %v616 = vld [vmem:[%s5 + $0x8] sm:$0xf]
  %v617 = vld [vmem:[%s5 + $0xc] sm:$0xf]
  %v618 = vld [vmem:[%s6] sm:$0x1]
  %v620 = vperm.slane %v618, 0
  %623 = vrot.lane.b32.xlu0 %v609, 32
  %v624 = vpop.permute.xlu0 %623
  %v629 = vunpack.c.l.b16 %v610
  %v630 = vunpack.c.l.b16 %v611
  %v631 = vunpack.c.l.b16 %v612
  %v632 = vunpack.c.l.b16 %v613
  %v633 = vpack.c.b16 %v630, %v629
  %v634 = vpack.c.b16 %v632, %v631
  %v638 = vsel %vm66, %v624, 0
  %640 = vmatpush.bf16.msra.mxu0 0
  %641 = vmatpush.bf16.msra.mxu0 0
  %642 = vmatpush.bf16.msra.mxu0 0
  %643 = vmatpush.bf16.msra.mxu0 0
  %644 = vmatpush.bf16.msra.mxu0 0
  %645 = vmatpush.bf16.msra.mxu0 0
  %646 = vmatpush.bf16.msra.mxu0 %v634
  %647 = vmatpush.bf16.msra.mxu0 %v633
  %648 = vmatmul.bf16.gmra.mxu0 %v638
  %v649 = vpop.f32.mrf.mxu0
  %v650 = vadd.f32 %v620, %v649
  %v651 = vpop.f32.mrf.mxu0
  %v652 = vadd.f32 %v620, %v651
  %653 = vdwg.mxu0
  %v658 = vunpack.c.l.b16 %v614
  %v659 = vunpack.c.l.b16 %v615
  %v660 = vunpack.c.l.b16 %v616
  %v661 = vunpack.c.l.b16 %v617
  %v662 = vpack.c.b16 %v659, %v658
  %v663 = vpack.c.b16 %v661, %v660
  %666 = vmatpush.bf16.msra.mxu0 0
  %667 = vmatpush.bf16.msra.mxu0 0
  %668 = vmatpush.bf16.msra.mxu0 0
  %669 = vmatpush.bf16.msra.mxu0 0
  %670 = vmatpush.bf16.msra.mxu0 0
  %671 = vmatpush.bf16.msra.mxu0 0
  %672 = vmatpush.bf16.msra.mxu0 %v663
  %673 = vmatpush.bf16.msra.mxu0 %v662
  %674 = vmatmul.bf16.gmra.mxu0 %v97
  %v675 = vpop.f32.mrf.mxu0
  %v676 = vadd.f32 0.0, %v675
  %v677 = vpop.f32.mrf.mxu0
  %678 = vdwg.mxu0
  %v679 = vadd.f32 %v650, %v676
  %v680 = vxor.u32 %v679, 2147483648
  %v681 = vmul.f32 %v680, 1.442695
  %v682 = vpow.pop %v681
  %v683 = vadd.f32 %v682, 1.0
  %v684 = vrcp.pop %v683
  %v685 = vmul.f32 %v683, %v684
  %v686 = vsub.f32 1.0, %v685
  %v687 = vmul.f32 %v684, %v686
  %v688 = vadd.f32 %v684, %v687
  %vm689 = vweird.f32 %v683
  %vm690 = vweird.f32 %v684
  %vm691 = vmor %vm689, %vm690
  %v692 = vsel %vm691, %v684, %v688
  %v693 = vand.u32 2147483647, %v683
  %vm694 = vcmp.eq.f32.partialorder %v693, 8.507059e+37
  %v695 = vand.u32 %v683, 2147483648
  %v696 = vor.u32 1.1754944e-38, %v695
  %v697 = vsel %vm694, %v696, %v692
  %v698 = vmul.f32 1.0, %v697
  %v699 = vtanh.pop %v679
  %v700 = vmul.f32 %v698, 0.0
  %702 = vrot.lane.b32.xlu0 %v699, 64
  %v703 = vpop.permute.xlu0 %702
  %v705 = vmul.f32 %v698, %v703
  %707 = vrot.lane.b32.xlu0 %v705, 32
  %v708 = vpop.permute.xlu0 %707
  %v710 = vadd.f32 %v700, %v708
  %v711 = vtanh.pop %v710
  %713 = vrot.lane.b32.xlu0 %v711, 64
  %v714 = vpop.permute.xlu0 %713
  %v716 = vmul.f32 %v698, %v714
  %v717 = vpack.c.bf16 %v716, %v716
  %719 = vrot.lane.b32.xlu0 %v717, 32
  %v720 = vpop.permute.xlu0 %719
  %v722 = vsel %vm66, %v720, 0
  %724 = vmatpush.bf16.msra.mxu0 0
  %725 = vmatpush.bf16.msra.mxu0 0
  %726 = vmatpush.bf16.msra.mxu0 0
  %727 = vmatpush.bf16.msra.mxu0 0
  %728 = vmatpush.bf16.msra.mxu0 0
  %729 = vmatpush.bf16.msra.mxu0 0
  %730 = vmatpush.bf16.msra.mxu0 %v663
  %731 = vmatpush.bf16.msra.mxu0 %v662
  %732 = vmatmul.bf16.gmra.mxu0 %v722
  %v733 = vpop.f32.mrf.mxu0
  %v734 = vadd.f32 0.0, %v733
  %v735 = vpop.f32.mrf.mxu0
  %736 = vdwg.mxu0
  %v738 = vrot.slane %v734, 6
  %v740 = vadd.f32 %v650, %v738
  %v741 = vxor.u32 %v740, 2147483648
  %v742 = vmul.f32 %v741, 1.442695
  %v743 = vpow.pop %v742
  %v744 = vadd.f32 %v743, 1.0
  %v745 = vrcp.pop %v744
  %v746 = vmul.f32 %v744, %v745
  %v747 = vsub.f32 1.0, %v746
  %v748 = vmul.f32 %v745, %v747
  %v749 = vadd.f32 %v745, %v748
  %vm750 = vweird.f32 %v744
  %vm751 = vweird.f32 %v745
  %vm752 = vmor %vm750, %vm751
  %v753 = vsel %vm752, %v745, %v749
  %v754 = vand.u32 2147483647, %v744
  %vm755 = vcmp.eq.f32.partialorder %v754, 8.507059e+37
  %v756 = vand.u32 %v744, 2147483648
  %v757 = vor.u32 1.1754944e-38, %v756
  %v758 = vsel %vm755, %v757, %v753
  %v759 = vmul.f32 1.0, %v758
  %v760 = vtanh.pop %v740
  %v762 = vrot.slane %v710, 6
  %v764 = vmul.f32 %v759, %v762
  %766 = vrot.lane.b32.xlu0 %v760, 64
  %v767 = vpop.permute.xlu0 %766
  %v769 = vmul.f32 %v759, %v767
  %771 = vrot.lane.b32.xlu0 %v769, 32
  %v772 = vpop.permute.xlu0 %771
  %v774 = vadd.f32 %v764, %v772
  %v775 = vtanh.pop %v774
  %777 = vrot.lane.b32.xlu0 %v775, 64
  %v778 = vpop.permute.xlu0 %777
  %v780 = vmul.f32 %v759, %v778
  %v781 = vpack.c.bf16 %v780, %v780
  %v783 = vrot.slane %v781, 1
  %784 = vrot.lane.b32.xlu0 %v783, 32
  %v785 = vpop.permute.xlu0 %784
  %v787 = vsel %vm66, %v785, 0
  %789 = vmatpush.bf16.msra.mxu0 0
  %790 = vmatpush.bf16.msra.mxu0 0
  %791 = vmatpush.bf16.msra.mxu0 0
  %792 = vmatpush.bf16.msra.mxu0 0
  %793 = vmatpush.bf16.msra.mxu0 0
  %794 = vmatpush.bf16.msra.mxu0 0
  %795 = vmatpush.bf16.msra.mxu0 %v663
  %796 = vmatpush.bf16.msra.mxu0 %v662
  %797 = vmatmul.bf16.gmra.mxu0 %v787
  %v798 = vpop.f32.mrf.mxu0
  %v799 = vadd.f32 0.0, %v798
  %v800 = vpop.f32.mrf.mxu0
  %801 = vdwg.mxu0
  %v803 = vrot.slane %v799, 4
  %v805 = vadd.f32 %v650, %v803
  %v806 = vxor.u32 %v805, 2147483648
  %v807 = vmul.f32 %v806, 1.442695
  %v808 = vpow.pop %v807
  %v809 = vadd.f32 %v808, 1.0
  %v810 = vrcp.pop %v809
  %v811 = vmul.f32 %v809, %v810
  %v812 = vsub.f32 1.0, %v811
  %v813 = vmul.f32 %v810, %v812
  %v814 = vadd.f32 %v810, %v813
  %vm815 = vweird.f32 %v809
  %vm816 = vweird.f32 %v810
  %vm817 = vmor %vm815, %vm816
  %v818 = vsel %vm817, %v810, %v814
  %v819 = vand.u32 2147483647, %v809
  %vm820 = vcmp.eq.f32.partialorder %v819, 8.507059e+37
  %v821 = vand.u32 %v809, 2147483648
  %v822 = vor.u32 1.1754944e-38, %v821
  %v823 = vsel %vm820, %v822, %v818
  %v824 = vmul.f32 1.0, %v823
  %v825 = vtanh.pop %v805
  %v827 = vrot.slane %v774, 6
  %v829 = vmul.f32 %v824, %v827
  %831 = vrot.lane.b32.xlu0 %v825, 64
  %v832 = vpop.permute.xlu0 %831
  %v834 = vmul.f32 %v824, %v832
  %836 = vrot.lane.b32.xlu0 %v834, 32
  %v837 = vpop.permute.xlu0 %836
  %v839 = vadd.f32 %v829, %v837
  %v840 = vtanh.pop %v839
  %842 = vrot.lane.b32.xlu0 %v840, 64
  %v843 = vpop.permute.xlu0 %842
  %v845 = vmul.f32 %v824, %v843
  %v846 = vpack.c.bf16 %v845, %v845
  %v848 = vrot.slane %v846, 2
  %849 = vrot.lane.b32.xlu0 %v848, 32
  %v850 = vpop.permute.xlu0 %849
  %v852 = vsel %vm66, %v850, 0
  %854 = vmatpush.bf16.msra.mxu0 0
  %855 = vmatpush.bf16.msra.mxu0 0
  %856 = vmatpush.bf16.msra.mxu0 0
  %857 = vmatpush.bf16.msra.mxu0 0
  %858 = vmatpush.bf16.msra.mxu0 0
  %859 = vmatpush.bf16.msra.mxu0 0
  %860 = vmatpush.bf16.msra.mxu0 %v663
  %861 = vmatpush.bf16.msra.mxu0 %v662
  %862 = vmatmul.bf16.gmra.mxu0 %v852
  %v863 = vpop.f32.mrf.mxu0
  %v864 = vadd.f32 0.0, %v863
  %v865 = vpop.f32.mrf.mxu0
  %866 = vdwg.mxu0
  %v868 = vrot.slane %v864, 2
  %v870 = vadd.f32 %v650, %v868
  %v871 = vxor.u32 %v870, 2147483648
  %v872 = vmul.f32 %v871, 1.442695
  %v873 = vpow.pop %v872
  %v874 = vadd.f32 %v873, 1.0
  %v875 = vrcp.pop %v874
  %v876 = vmul.f32 %v874, %v875
  %v877 = vsub.f32 1.0, %v876
  %v878 = vmul.f32 %v875, %v877
  %v879 = vadd.f32 %v875, %v878
  %vm880 = vweird.f32 %v874
  %vm881 = vweird.f32 %v875
  %vm882 = vmor %vm880, %vm881
  %v883 = vsel %vm882, %v875, %v879
  %v884 = vand.u32 2147483647, %v874
  %vm885 = vcmp.eq.f32.partialorder %v884, 8.507059e+37
  %v886 = vand.u32 %v874, 2147483648
  %v887 = vor.u32 1.1754944e-38, %v886
  %v888 = vsel %vm885, %v887, %v883
  %v889 = vmul.f32 1.0, %v888
  %v890 = vtanh.pop %v870
  %v892 = vrot.slane %v839, 6
  %v894 = vmul.f32 %v889, %v892
  %896 = vrot.lane.b32.xlu0 %v890, 64
  %v897 = vpop.permute.xlu0 %896
  %v899 = vmul.f32 %v889, %v897
  %901 = vrot.lane.b32.xlu0 %v899, 32
  %v902 = vpop.permute.xlu0 %901
  %v904 = vadd.f32 %v894, %v902
  %v905 = vtanh.pop %v904
  %907 = vrot.lane.b32.xlu0 %v905, 64
  %v908 = vpop.permute.xlu0 %907
  %v910 = vmul.f32 %v889, %v908
  %v911 = vpack.c.bf16 %v910, %v910
  %v913 = vrot.slane %v911, 3
  %914 = vrot.lane.b32.xlu0 %v913, 32
  %v915 = vpop.permute.xlu0 %914
  %v917 = vsel %vm66, %v915, 0
  %919 = vmatpush.bf16.msra.mxu0 0
  %920 = vmatpush.bf16.msra.mxu0 0
  %921 = vmatpush.bf16.msra.mxu0 0
  %922 = vmatpush.bf16.msra.mxu0 0
  %923 = vmatpush.bf16.msra.mxu0 0
  %924 = vmatpush.bf16.msra.mxu0 0
  %925 = vmatpush.bf16.msra.mxu0 %v663
  %926 = vmatpush.bf16.msra.mxu0 %v662
  %927 = vmatmul.bf16.gmra.mxu0 %v917
  %v928 = vpop.f32.mrf.mxu0
  %v929 = vadd.f32 0.0, %v928
  %v930 = vpop.f32.mrf.mxu0
  %931 = vdwg.mxu0
  %v932 = vadd.f32 %v652, %v929
  %v933 = vxor.u32 %v932, 2147483648
  %v934 = vmul.f32 %v933, 1.442695
  %v935 = vpow.pop %v934
  %v936 = vadd.f32 %v935, 1.0
  %v937 = vrcp.pop %v936
  %v938 = vmul.f32 %v936, %v937
  %v939 = vsub.f32 1.0, %v938
  %v940 = vmul.f32 %v937, %v939
  %v941 = vadd.f32 %v937, %v940
  %vm942 = vweird.f32 %v936
  %vm943 = vweird.f32 %v937
  %vm944 = vmor %vm942, %vm943
  %v945 = vsel %vm944, %v937, %v941
  %v946 = vand.u32 2147483647, %v936
  %vm947 = vcmp.eq.f32.partialorder %v946, 8.507059e+37
  %v948 = vand.u32 %v936, 2147483648
  %v949 = vor.u32 1.1754944e-38, %v948
  %v950 = vsel %vm947, %v949, %v945
  %v951 = vmul.f32 1.0, %v950
  %v952 = vtanh.pop %v932
  %v954 = vrot.slane %v904, 6
  %v956 = vmul.f32 %v951, %v954
  %958 = vrot.lane.b32.xlu0 %v952, 64
  %v959 = vpop.permute.xlu0 %958
  %v961 = vmul.f32 %v951, %v959
  %963 = vrot.lane.b32.xlu0 %v961, 32
  %v964 = vpop.permute.xlu0 %963
  %v966 = vadd.f32 %v956, %v964
  %v967 = vtanh.pop %v966
  %969 = vrot.lane.b32.xlu0 %v967, 64
  %v970 = vpop.permute.xlu0 %969
  %v972 = vmul.f32 %v951, %v970
  %v973 = vpack.c.bf16 %v972, %v972
  %975 = vrot.lane.b32.xlu0 %v973, 32
  %v976 = vpop.permute.xlu0 %975
  %v978 = vsel %vm66, %v976, 0
  %980 = vmatpush.bf16.msra.mxu0 0
  %981 = vmatpush.bf16.msra.mxu0 0
  %982 = vmatpush.bf16.msra.mxu0 0
  %983 = vmatpush.bf16.msra.mxu0 0
  %984 = vmatpush.bf16.msra.mxu0 0
  %985 = vmatpush.bf16.msra.mxu0 0
  %986 = vmatpush.bf16.msra.mxu0 %v663
  %987 = vmatpush.bf16.msra.mxu0 %v662
  %988 = vmatmul.bf16.gmra.mxu0 %v978
  %v989 = vpop.f32.mrf.mxu0
  %v990 = vadd.f32 0.0, %v989
  %v991 = vpop.f32.mrf.mxu0
  %992 = vdwg.mxu0
  %v994 = vrot.slane %v990, 6
  %v996 = vadd.f32 %v652, %v994
  %v997 = vxor.u32 %v996, 2147483648
  %v998 = vmul.f32 %v997, 1.442695
  %v999 = vpow.pop %v998
  %v1000 = vadd.f32 %v999, 1.0
  %v1001 = vrcp.pop %v1000
  %v1002 = vmul.f32 %v1000, %v1001
  %v1003 = vsub.f32 1.0, %v1002
  %v1004 = vmul.f32 %v1001, %v1003
  %v1005 = vadd.f32 %v1001, %v1004
  %vm1006 = vweird.f32 %v1000
  %vm1007 = vweird.f32 %v1001
  %vm1008 = vmor %vm1006, %vm1007
  %v1009 = vsel %vm1008, %v1001, %v1005
  %v1010 = vand.u32 2147483647, %v1000
  %vm1011 = vcmp.eq.f32.partialorder %v1010, 8.507059e+37
  %v1012 = vand.u32 %v1000, 2147483648
  %v1013 = vor.u32 1.1754944e-38, %v1012
  %v1014 = vsel %vm1011, %v1013, %v1009
  %v1015 = vmul.f32 1.0, %v1014
  %v1016 = vtanh.pop %v996
  %v1018 = vrot.slane %v966, 6
  %v1020 = vmul.f32 %v1015, %v1018
  %1022 = vrot.lane.b32.xlu0 %v1016, 64
  %v1023 = vpop.permute.xlu0 %1022
  %v1025 = vmul.f32 %v1015, %v1023
  %1027 = vrot.lane.b32.xlu0 %v1025, 32
  %v1028 = vpop.permute.xlu0 %1027
  %v1030 = vadd.f32 %v1020, %v1028
  %v1031 = vtanh.pop %v1030
  %1033 = vrot.lane.b32.xlu0 %v1031, 64
  %v1034 = vpop.permute.xlu0 %1033
  %v1036 = vmul.f32 %v1015, %v1034
  %v1037 = vpack.c.bf16 %v1036, %v1036
  %v1039 = vrot.slane %v1037, 1
  %1040 = vrot.lane.b32.xlu0 %v1039, 32
  %v1041 = vpop.permute.xlu0 %1040
  %v1043 = vsel %vm66, %v1041, 0
  %1045 = vmatpush.bf16.msra.mxu0 0
  %1046 = vmatpush.bf16.msra.mxu0 0
  %1047 = vmatpush.bf16.msra.mxu0 0
  %1048 = vmatpush.bf16.msra.mxu0 0
  %1049 = vmatpush.bf16.msra.mxu0 0
  %1050 = vmatpush.bf16.msra.mxu0 0
  %1051 = vmatpush.bf16.msra.mxu0 %v663
  %1052 = vmatpush.bf16.msra.mxu0 %v662
  %1053 = vmatmul.bf16.gmra.mxu0 %v1043
  %v1054 = vpop.f32.mrf.mxu0
  %v1055 = vadd.f32 0.0, %v1054
  %v1056 = vpop.f32.mrf.mxu0
  %1057 = vdwg.mxu0
  %v1059 = vrot.slane %v1055, 4
  %v1061 = vadd.f32 %v652, %v1059
  %v1062 = vxor.u32 %v1061, 2147483648
  %v1063 = vmul.f32 %v1062, 1.442695
  %v1064 = vpow.pop %v1063
  %v1065 = vadd.f32 %v1064, 1.0
  %v1066 = vrcp.pop %v1065
  %v1067 = vmul.f32 %v1065, %v1066
  %v1068 = vsub.f32 1.0, %v1067
  %v1069 = vmul.f32 %v1066, %v1068
  %v1070 = vadd.f32 %v1066, %v1069
  %vm1071 = vweird.f32 %v1065
  %vm1072 = vweird.f32 %v1066
  %vm1073 = vmor %vm1071, %vm1072
  %v1074 = vsel %vm1073, %v1066, %v1070
  %v1075 = vand.u32 2147483647, %v1065
  %vm1076 = vcmp.eq.f32.partialorder %v1075, 8.507059e+37
  %v1077 = vand.u32 %v1065, 2147483648
  %v1078 = vor.u32 1.1754944e-38, %v1077
  %v1079 = vsel %vm1076, %v1078, %v1074
  %v1080 = vmul.f32 1.0, %v1079
  %v1081 = vtanh.pop %v1061
  %v1083 = vrot.slane %v1030, 6
  %v1085 = vmul.f32 %v1080, %v1083
  %1087 = vrot.lane.b32.xlu0 %v1081, 64
  %v1088 = vpop.permute.xlu0 %1087
  %v1090 = vmul.f32 %v1080, %v1088
  %1092 = vrot.lane.b32.xlu0 %v1090, 32
  %v1093 = vpop.permute.xlu0 %1092
  %v1095 = vadd.f32 %v1085, %v1093
  %v1096 = vtanh.pop %v1095
  %1098 = vrot.lane.b32.xlu0 %v1096, 64
  %v1099 = vpop.permute.xlu0 %1098
  %v1101 = vmul.f32 %v1080, %v1099
  %v1102 = vpack.c.bf16 %v1101, %v1101
  %v1104 = vrot.slane %v1102, 2
  %1105 = vrot.lane.b32.xlu0 %v1104, 32
  %v1106 = vpop.permute.xlu0 %1105
  %v1108 = vsel %vm66, %v1106, 0
  %1110 = vmatpush.bf16.msra.mxu0 0
  %1111 = vmatpush.bf16.msra.mxu0 0
  %1112 = vmatpush.bf16.msra.mxu0 0
  %1113 = vmatpush.bf16.msra.mxu0 0
  %1114 = vmatpush.bf16.msra.mxu0 0
  %1115 = vmatpush.bf16.msra.mxu0 0
  %1116 = vmatpush.bf16.msra.mxu0 %v663
  %1117 = vmatpush.bf16.msra.mxu0 %v662
  %1118 = vmatmul.bf16.gmra.mxu0 %v1108
  %v1119 = vpop.f32.mrf.mxu0
  %v1120 = vadd.f32 0.0, %v1119
  %v1121 = vpop.f32.mrf.mxu0
  %1122 = vdwg.mxu0
  %v1124 = vrot.slane %v1120, 2
  %v1126 = vadd.f32 %v652, %v1124
  %v1127 = vxor.u32 %v1126, 2147483648
  %v1128 = vmul.f32 %v1127, 1.442695
  %v1129 = vpow.pop %v1128
  %v1130 = vadd.f32 %v1129, 1.0
  %v1131 = vrcp.pop %v1130
  %v1132 = vmul.f32 %v1130, %v1131
  %v1133 = vsub.f32 1.0, %v1132
  %v1134 = vmul.f32 %v1131, %v1133
  %v1135 = vadd.f32 %v1131, %v1134
  %vm1136 = vweird.f32 %v1130
  %vm1137 = vweird.f32 %v1131
  %vm1138 = vmor %vm1136, %vm1137
  %v1139 = vsel %vm1138, %v1131, %v1135
  %v1140 = vand.u32 2147483647, %v1130
  %vm1141 = vcmp.eq.f32.partialorder %v1140, 8.507059e+37
  %v1142 = vand.u32 %v1130, 2147483648
  %v1143 = vor.u32 1.1754944e-38, %v1142
  %v1144 = vsel %vm1141, %v1143, %v1139
  %v1145 = vmul.f32 1.0, %v1144
  %v1146 = vtanh.pop %v1126
  %v1148 = vrot.slane %v1095, 6
  %v1150 = vmul.f32 %v1145, %v1148
  %1152 = vrot.lane.b32.xlu0 %v1146, 64
  %v1153 = vpop.permute.xlu0 %1152
  %v1155 = vmul.f32 %v1145, %v1153
  %1157 = vrot.lane.b32.xlu0 %v1155, 32
  %v1158 = vpop.permute.xlu0 %1157
  %v1160 = vadd.f32 %v1150, %v1158
  %v1161 = vtanh.pop %v1160
  %1163 = vrot.lane.b32.xlu0 %v1161, 64
  %v1164 = vpop.permute.xlu0 %1163
  %v1166 = vmul.f32 %v1145, %v1164
  %v1167 = vld [vmem:[%s7] sm:$0x1]
  %v1169 = vperm.slane %v1167, 0
  %1170 = vrot.lane.b32.xlu0 %v1169, 96
  %v1171 = vpop.permute.xlu0 %1170
  %v1173 = vmul.f32 %v1166, %v1171
  %1175 = vrot.lane.b32.xlu0 %v1173, 32
  %v1176 = vpop.permute.xlu0 %1175
  %vm1178 = vcmask 261126
  %v1179 = vsel %vm1178, %v1176, 0.0
  %1180 = vadd.xlane.f32.xlu0 %v1179
  %v1181 = vpop.xlane.xlu0 %1180
  %v1182 = vld [vmem:[#allocation2] sm:$0x1]
  %v1184 = vperm.slane %v1182, 0
  %v1186 = vadd.f32 %v1181, %v1184
  %v1187 = vxor.u32 %v1186, 2147483648
  %v1188 = vmul.f32 %v1187, 1.442695
  %v1189 = vpow.pop %v1188
  %v1190 = vadd.f32 %v1189, 1.0
  %v1191 = vrcp.pop %v1190
  %v1192 = vmul.f32 %v1190, %v1191
  %v1193 = vsub.f32 1.0, %v1192
  %v1194 = vmul.f32 %v1191, %v1193
  %v1195 = vadd.f32 %v1191, %v1194
  %vm1196 = vweird.f32 %v1190
  %vm1197 = vweird.f32 %v1191
  %vm1198 = vmor %vm1196, %vm1197
  %v1199 = vsel %vm1198, %v1191, %v1195
  %v1200 = vand.u32 2147483647, %v1190
  %vm1201 = vcmp.eq.f32.partialorder %v1200, 8.507059e+37
  %v1202 = vand.u32 %v1190, 2147483648
  %v1203 = vor.u32 1.1754944e-38, %v1202
  %v1204 = vsel %vm1201, %v1203, %v1199
  %v1205 = vmul.f32 1.0, %v1204
  %vm1206 = vcmask 7174
  %1207 = vst.msk [vmem:[%s9 - $0x6] sm:$0xc0] %vm1206, %v1205
  // Predicated region
  $region38: #{net_forward.1} parent=0 // pred_check
    _
  $region39: #{net_forward.1} parent=0 // pred_check_branch
    %1209 = sbr.rel (0) target = $region41
  $region40: #{net_forward.1} parent=0 // pred_region
    _
  $region41: #{net_forward.1} parent=0 // pred_fallthru
    _
  // Predicated region
  $region42: #{net_forward.1} parent=0 // pred_check
    _
  $region43: #{net_forward.1} parent=0 // pred_check_branch
    %1211 = sbr.rel (0) target = $region45
  $region44: #{net_forward.1} parent=0 // pred_region
    _
  $region45: #{net_forward.1} parent=0 // pred_fallthru
    _

</llo_original>
